<compile_context>
chip_gen: v6e
topology: v6e:2x2x1
jax: 0.10.0
libtpu: 0.0.40
codegen_flags: <defaults>
</compile_context>

<pallas_src>
import functools
import math

import jax
import jax.numpy as jnp
from jax import lax
from jax.experimental import pallas as pl
from jax.experimental.pallas import tpu as pltpu


LANE = 128  # vreg lane width / MXU tile: pad feature dims to multiples of this


def _round_up(x, m):
    return ((x + m - 1) // m) * m


def _largest_divisor_tile(n_pad, target):
    """Largest multiple of LANE that is <= target and divides n_pad."""
    t = min(target, n_pad)
    t -= t % LANE
    while t > LANE and n_pad % t:
        t -= LANE
    return max(t, LANE)


# ---------------- Pallas kernels ----------------

def _fused_mlp_kernel(x_ref, w1_ref, b1_ref, w2_ref, b2_ref, h_ref):
    # h = relu(x @ W1 + b1) @ W2 + b2
    # bf16 operands on the MXU, f32 accumulation, f32 epilogue, bf16 store.
    y = jnp.dot(x_ref[...], w1_ref[...], preferred_element_type=jnp.float32)
    y = jnp.maximum(y + b1_ref[...], 0.0)                      # bias + ReLU (f32)
    z = jnp.dot(y.astype(w2_ref.dtype), w2_ref[...],
                preferred_element_type=jnp.float32)
    h_ref[...] = (z + b2_ref[...]).astype(h_ref.dtype)         # bf16 writeback


def _appnp_prop_kernel(a_ref, h_ref, o_ref, z_ref, *, alpha):
    # grid = (K, M): K propagation steps (sequential), M row tiles of A_hat.
    #   a_ref : (tile_m, n_pad) bf16 row tile of A_hat, streamed per (k, m)
    #   h_ref : (n_pad, c_pad)  bf16, resident (Buffered(1))
    #   z_ref : (2*n_pad, c_pad) bf16 VMEM ping-pong scratch (Jacobi update)
    #   o_ref : (tile_m, c_pad) f32 output row tile (final k overwrites earlier)
    k = pl.program_id(0)
    m = pl.program_id(1)
    tile_m, n_pad = a_ref.shape

    @pl.when(jnp.logical_and(k == 0, m == 0))
    def _init():
        z_ref[:n_pad, :] = h_ref[...]                          # z_0 = h

    read_base = pl.multiple_of(lax.rem(k, 2) * n_pad, n_pad)
    write_base = pl.multiple_of(lax.rem(k + 1, 2) * n_pad, n_pad)
    row0 = pl.multiple_of(m * tile_m, tile_m)

    z_old = z_ref[pl.ds(read_base, n_pad), :]                  # bf16 (n_pad, c_pad)
    h_tile = h_ref[pl.ds(row0, tile_m), :].astype(jnp.float32)

    prop = jnp.dot(a_ref[...], z_old, preferred_element_type=jnp.float32)
    z_new = (1.0 - alpha) * prop + alpha * h_tile              # f32 epilogue

    z_ref[pl.ds(write_base + row0, tile_m), :] = z_new.astype(z_ref.dtype)
    o_ref[...] = z_new


# ---------------- pallas_call wrappers ----------------

def fused_mlp(x_pad, w1, b1, w2, b2, *, tile_n):
    """relu(x @ W1 + b1) @ W2 + b2, row-tiled.  x_pad: (n_pad, cin_p) bf16 -> bf16."""
    n_pad, cin_p = x_pad.shape
    hid_p = w1.shape[1]
    out_p = w2.shape[1]
    grid = (n_pad // tile_n,)

    flops = 2 * n_pad * (cin_p * hid_p + hid_p * out_p)
    bytes_accessed = (x_pad.size * x_pad.dtype.itemsize
                      + w1.size * w1.dtype.itemsize
                      + w2.size * w2.dtype.itemsize
                      + b1.size * b1.dtype.itemsize
                      + b2.size * b2.dtype.itemsize
                      + n_pad * out_p * 2)

    resident = pl.Buffered(1)   # constant index map -> single buffer is enough
    return pl.pallas_call(
        _fused_mlp_kernel,
        out_shape=jax.ShapeDtypeStruct((n_pad, out_p), jnp.bfloat16),
        grid_spec=pltpu.PrefetchScalarGridSpec(
            num_scalar_prefetch=0,
            grid=grid,
            in_specs=[
                pl.BlockSpec((tile_n, cin_p), lambda i: (i, 0)),       # x row tile
                pl.BlockSpec((cin_p, hid_p), lambda i: (0, 0),
                             pipeline_mode=resident),                  # W1 (resident)
                pl.BlockSpec((1, hid_p), lambda i: (0, 0),
                             pipeline_mode=resident),                  # b1
                pl.BlockSpec((hid_p, out_p), lambda i: (0, 0),
                             pipeline_mode=resident),                  # W2 (resident)
                pl.BlockSpec((1, out_p), lambda i: (0, 0),
                             pipeline_mode=resident),                  # b2
            ],
            out_specs=pl.BlockSpec((tile_n, out_p), lambda i: (i, 0)),
        ),
        compiler_params=pltpu.CompilerParams(
            dimension_semantics=("parallel",)),
        cost_estimate=pl.CostEstimate(
            flops=flops, transcendentals=0, bytes_accessed=bytes_accessed),
    )(x_pad, w1, b1, w2, b2)


def appnp_propagate(a_hat, h, *, K, alpha, tile_m):
    """K steps of z = (1-alpha) * A_hat @ z + alpha * h, z_0 = h.

    A_hat (bf16, dense, padded) is streamed as (tile_m, n_pad) row tiles; h is
    resident in VMEM (bf16); z lives in a ping-pong VMEM scratch (bf16) so each
    step is a full Jacobi update.  Output is f32.
    """
    if K == 0:
        return h.astype(jnp.float32)
    n_pad, c_pad = h.shape
    m_tiles = n_pad // tile_m
    kernel = functools.partial(_appnp_prop_kernel, alpha=float(alpha))

    # VMEM footprint: A row tile (double-buffered) + resident h + z ping-pong
    # + output tile (double-buffered); add margin, cap at 128 MiB.
    a_bytes = 2 * tile_m * n_pad * 2
    h_bytes = n_pad * c_pad * 2
    z_bytes = 2 * n_pad * c_pad * 2
    o_bytes = 2 * tile_m * c_pad * 4
    vmem_limit = int(min(max(1.3 * (a_bytes + h_bytes + z_bytes + o_bytes)
                             + (4 << 20), 32 << 20), 128 << 20))

    flops = 2 * K * n_pad * n_pad * c_pad
    bytes_accessed = (K * n_pad * n_pad * 2          # A row-tile reads per step
                      + n_pad * c_pad * 2            # h read once
                      + K * n_pad * c_pad * 4)       # output writebacks

    return pl.pallas_call(
        kernel,
        out_shape=jax.ShapeDtypeStruct((n_pad, c_pad), jnp.float32),
        grid_spec=pltpu.PrefetchScalarGridSpec(
            num_scalar_prefetch=0,
            grid=(K, m_tiles),
            in_specs=[
                pl.BlockSpec((tile_m, n_pad), lambda k, m: (m, 0)),    # A_hat rows (streamed)
                pl.BlockSpec((n_pad, c_pad), lambda k, m: (0, 0),
                             pipeline_mode=pl.Buffered(1)),            # h (resident)
            ],
            out_specs=pl.BlockSpec((tile_m, c_pad), lambda k, m: (m, 0)),
            scratch_shapes=[pltpu.VMEM((2 * n_pad, c_pad), jnp.bfloat16)],
        ),
        compiler_params=pltpu.CompilerParams(
            dimension_semantics=("arbitrary", "arbitrary"),
            vmem_limit_bytes=vmem_limit),
        cost_estimate=pl.CostEstimate(
            flops=flops, transcendentals=0, bytes_accessed=bytes_accessed),
    )(a_hat, h)


# ---------------- parameter init / preprocessing ----------------

def _init_linear(key, fan_in, fan_out):
    # nn.Linear defaults: W, b ~ U(-1/sqrt(fan_in), 1/sqrt(fan_in)).
    kw, kb = jax.random.split(key)
    bound = 1.0 / math.sqrt(fan_in)
    w = jax.random.uniform(kw, (fan_out, fan_in), jnp.float32, -bound, bound)
    b = jax.random.uniform(kb, (fan_out,), jnp.float32, -bound, bound)
    return w.T, b[None, :]                      # (fan_in, fan_out), (1, fan_out)


def _pad2d(a, rows, cols):
    out = jnp.zeros((rows, cols), a.dtype)
    return out.at[:a.shape[0], :a.shape[1]].set(a)


def _build_norm_adj(edge_index, num_nodes, n_pad, dtype):
    # gcn_norm: A_hat = D^{-1/2} (A + I) D^{-1/2}, built dense at padded size
    # in one shot (plain JAX preprocessing), cast once to the MXU dtype.
    src, dst = edge_index[0], edge_index[1]
    a = jnp.zeros((n_pad, n_pad), jnp.float32)
    a = a.at[dst, src].add(1.0)                 # message src -> dst
    idx = jnp.arange(num_nodes)
    a = a.at[idx, idx].add(1.0)                 # self-loops for real nodes only
    deg = a.sum(axis=1)                         # padded rows stay zero
    dinv = jnp.where(deg > 0, lax.rsqrt(deg), 0.0)
    return (a * dinv[:, None] * dinv[None, :]).astype(dtype)


# ---------------- model ----------------

class APPNPNetPallas:
    """Eval-mode forward of APPNPNet (dropout -> lin1 -> relu -> dropout -> lin2 -> APPNP)."""

    def __init__(self, in_channels, hidden_channels, out_channels, *,
                 K, alpha, dropout, key, tile_n=None, tile_m=None):
        self.K = int(K)
        self.alpha = float(alpha)
        self.dropout = dropout       # identity in eval mode (see TODO above)
        for t in (tile_n, tile_m):
            if t is not None:
                assert t > 0 and t % LANE == 0, "tile sizes must be multiples of 128"
        self.tile_n = tile_n         # MLP row tile (default: up to 512, clamped)
        self.tile_m = tile_m         # propagation row tile (default: up to 256, clamped)
        self.in_c, self.hid_c, self.out_c = in_channels, hidden_channels, out_channels

        self.cin_p = _round_up(in_channels, LANE)
        self.hid_p = _round_up(hidden_channels, LANE)
        self.out_p = _round_up(out_channels, LANE)

        k1, k2 = jax.random.split(key)
        w1, b1 = _init_linear(k1, in_channels, hidden_channels)
        w2, b2 = _init_linear(k2, hidden_channels, out_channels)

        # keep unpadded f32 copies for the pure-JAX reference
        self._w1, self._b1 = w1, b1
        self._w2, self._b2 = w2, b2

        # zero-pad to lane-dense shapes; weights bf16 (MXU native), biases f32.
        self.w1 = _pad2d(w1, self.cin_p, self.hid_p).astype(jnp.bfloat16)
        self.b1 = _pad2d(b1, 1, self.hid_p)
        self.w2 = _pad2d(w2, self.hid_p, self.out_p).astype(jnp.bfloat16)
        self.b2 = _pad2d(b2, 1, self.out_p)

    @functools.partial(jax.jit, static_argnums=0)
    def __call__(self, x, edge_index):
        n = x.shape[0]
        n_pad = _round_up(max(n, 1), LANE)
        if self.tile_m is not None:
            n_pad = _round_up(n_pad, self.tile_m)
        if self.tile_n is not None:
            n_pad = _round_up(n_pad, self.tile_n)
        tile_m = self.tile_m or _largest_divisor_tile(n_pad, 256)
        tile_n = self.tile_n or _largest_divisor_tile(n_pad, 512)

        # zero-pad nodes & features directly in bf16; padded weight rows/cols are
        # zero and padded nodes have no edges, so padding never affects real rows.
        x_pad = (jnp.zeros((n_pad, self.cin_p), jnp.bfloat16)
                 .at[:n, :self.in_c].set(x.astype(jnp.bfloat16)))

        # dropout: identity in eval mode.
        h = fused_mlp(x_pad, self.w1, self.b1, self.w2, self.b2, tile_n=tile_n)

        a_hat = _build_norm_adj(edge_index, n, n_pad, jnp.bfloat16)

        z = appnp_propagate(a_hat, h, K=self.K, alpha=self.alpha, tile_m=tile_m)
        return z[:n, :self.out_c]

    def reference(self, x, edge_index):
        """Pure-JAX f32 forward (mirrors the PyTorch module) for validation."""
        h = jnp.maximum(x @ self._w1 + self._b1, 0.0)
        h = h @ self._w2 + self._b2
        n = x.shape[0]
        a = _build_norm_adj(edge_index, n, n, jnp.float32)
        z = h
        for _ in range(self.K):
            z = (1.0 - self.alpha) * (a @ z) + self.alpha * h
        return z


if __name__ == "__main__":
    # small graph: 200 nodes, in=16, hidden=32, out=8, K=10, alpha=0.1
    N, IN_C, HID_C, OUT_C = 200, 16, 32, 8
    K, ALPHA, DROPOUT = 10, 0.1, 0.5

    key = jax.random.PRNGKey(0)
    k_params, k_x, k_e1, k_e2 = jax.random.split(key, 4)

    # tile_m=128 -> n_pad=256 gives 2 streamed A row tiles, exercising the
    # row-tiled ping-pong propagation path even at this small size.
    model = APPNPNetPallas(IN_C, HID_C, OUT_C, K=K, alpha=ALPHA,
                           dropout=DROPOUT, key=k_params, tile_m=128)

    x = jax.random.normal(k_x, (N, IN_C), jnp.float32)

    # random undirected edge list, stored with both directions: (2, 2E)
    E = 600
    src = jax.random.randint(k_e1, (E,), 0, N)
    dst = jax.random.randint(k_e2, (E,), 0, N)
    edge_index = jnp.concatenate(
        [jnp.stack([src, dst]), jnp.stack([dst, src])], axis=1)

    out = model(x, edge_index)
    jax.block_until_ready(out)

    assert out.shape == (N, OUT_C), out.shape
    assert out.dtype == jnp.float32, out.dtype
    assert bool(jnp.all(jnp.isfinite(out)))

    # bf16 operands vs. f32 reference -> relaxed tolerance.
    ref = model.reference(x, edge_index)
    err = float(jnp.max(jnp.abs(out - ref)))
    assert err < 1e-1, f"max abs error vs f32 reference too large: {err}"
    print("KERNEL_OK")
</pallas_src>

<mosaic_0001>
module attributes {stable_mosaic.version = 11 : i64} {
  func.func private @main(%arg0: i32) attributes {dimension_semantics = [#tpu.dimension_semantics<core_parallel>], iteration_bounds = array<i64: 2>, tpu.core_type = #tpu.core_type<sc_scalar_subcore>, window_params = []} {
    return
  }
}

module attributes {stable_mosaic.version = 11 : i64} {
  func.func private @main(%arg0: i32) attributes {dimension_semantics = [#tpu.dimension_semantics<core_parallel>], iteration_bounds = array<i64: 2>, tpu.core_type = #tpu.core_type<sc_scalar_subcore>, window_params = []} {
    return
  }
}

module attributes {stable_mosaic.version = 11 : i64} {
  func.func @_fused_mlp_kernel(%arg0: i32, %arg1: memref<256x128xbf16, #tpu.memory_space<vmem>>, %arg2: memref<128x128xbf16, #tpu.memory_space<vmem>>, %arg3: memref<1x128xf32, #tpu.memory_space<vmem>>, %arg4: memref<128x128xbf16, #tpu.memory_space<vmem>>, %arg5: memref<1x128xf32, #tpu.memory_space<vmem>>, %arg6: memref<256x128xbf16, #tpu.memory_space<vmem>>) attributes {dimension_semantics = [#tpu.dimension_semantics<parallel>], iteration_bounds = array<i64: 1>, scalar_prefetch = 0 : i64, scratch_operands = 0 : i64, tpu.core_type = #tpu.core_type<tc>, window_params = [{transform_indices = @transform_0, window_bounds = array<i64: 256, 128>}, {pipeline_mode = #tpu.pipeline_mode<synchronous>, transform_indices = @transform_1, window_bounds = array<i64: 128, 128>}, {pipeline_mode = #tpu.pipeline_mode<synchronous>, transform_indices = @transform_2, window_bounds = array<i64: 1, 128>}, {pipeline_mode = #tpu.pipeline_mode<synchronous>, transform_indices = @transform_3, window_bounds = array<i64: 128, 128>}, {pipeline_mode = #tpu.pipeline_mode<synchronous>, transform_indices = @transform_4, window_bounds = array<i64: 1, 128>}, {transform_indices = @transform_5, window_bounds = array<i64: 256, 128>}]} {
    %c0 = arith.constant 0 : index
    %c0_0 = arith.constant 0 : index
    %0 = vector.load %arg1[%c0, %c0_0] : memref<256x128xbf16, #tpu.memory_space<vmem>>, vector<256x128xbf16>
    %c0_1 = arith.constant 0 : index
    %c0_2 = arith.constant 0 : index
    %1 = vector.load %arg2[%c0_1, %c0_2] : memref<128x128xbf16, #tpu.memory_space<vmem>>, vector<128x128xbf16>
    %cst = arith.constant dense<0.000000e+00> : vector<256x128xf32>
    %2 = tpu.matmul %0, %1, %cst {dimension_numbers = #tpu.dot_dimension_numbers<[1], [0], [0], [1], [0, 0, 1, 1], [], []>} : vector<256x128xbf16>, vector<128x128xbf16>, vector<256x128xf32> -> vector<256x128xf32>
    %c0_3 = arith.constant 0 : index
    %c0_4 = arith.constant 0 : index
    %3 = vector.load %arg3[%c0_3, %c0_4] : memref<1x128xf32, #tpu.memory_space<vmem>>, vector<1x128xf32>
    %4 = vector.broadcast %3 : vector<1x128xf32> to vector<256x128xf32>
    %5 = arith.addf %2, %4 : vector<256x128xf32>
    %cst_5 = arith.constant 0.000000e+00 : f32
    %6 = vector.broadcast %cst_5 : f32 to vector<256x128xf32>
    %7 = arith.maximumf %5, %6 : vector<256x128xf32>
    %8 = arith.truncf %7 : vector<256x128xf32> to vector<256x128xbf16>
    %c0_6 = arith.constant 0 : index
    %c0_7 = arith.constant 0 : index
    %9 = vector.load %arg4[%c0_6, %c0_7] : memref<128x128xbf16, #tpu.memory_space<vmem>>, vector<128x128xbf16>
    %cst_8 = arith.constant dense<0.000000e+00> : vector<256x128xf32>
    %10 = tpu.matmul %8, %9, %cst_8 {dimension_numbers = #tpu.dot_dimension_numbers<[1], [0], [0], [1], [0, 0, 1, 1], [], []>} : vector<256x128xbf16>, vector<128x128xbf16>, vector<256x128xf32> -> vector<256x128xf32>
    %c0_9 = arith.constant 0 : index
    %c0_10 = arith.constant 0 : index
    %11 = vector.load %arg5[%c0_9, %c0_10] : memref<1x128xf32, #tpu.memory_space<vmem>>, vector<1x128xf32>
    %12 = vector.broadcast %11 : vector<1x128xf32> to vector<256x128xf32>
    %13 = arith.addf %10, %12 : vector<256x128xf32>
    %14 = arith.truncf %13 : vector<256x128xf32> to vector<256x128xbf16>
    %c0_11 = arith.constant 0 : index
    %c0_12 = arith.constant 0 : index
    %15 = vector.load %arg6[%c0_11, %c0_12] : memref<256x128xbf16, #tpu.memory_space<vmem>>, vector<256x128xbf16>
    tpu.vector_store %arg6[%c0_11, %c0_12], %14 {strides = array<i32>} : memref<256x128xbf16, #tpu.memory_space<vmem>>, vector<256x128xbf16>,
    return
  }
  func.func @transform_0(%arg0: i32) -> (i32, i32) {
    %c0_i32 = arith.constant 0 : i32
    %c0_i32_0 = arith.constant 0 : i32
    return %arg0, %c0_i32 : i32, i32
  }
  func.func @transform_1(%arg0: i32) -> (i32, i32) {
    %c0_i32 = arith.constant 0 : i32
    %c0_i32_0 = arith.constant 0 : i32
    %c0_i32_1 = arith.constant 0 : i32
    return %c0_i32, %c0_i32_0 : i32, i32
  }
  func.func @transform_2(%arg0: i32) -> (i32, i32) {
    %c0_i32 = arith.constant 0 : i32
    %c0_i32_0 = arith.constant 0 : i32
    %c0_i32_1 = arith.constant 0 : i32
    return %c0_i32, %c0_i32_0 : i32, i32
  }
  func.func @transform_3(%arg0: i32) -> (i32, i32) {
    %c0_i32 = arith.constant 0 : i32
    %c0_i32_0 = arith.constant 0 : i32
    %c0_i32_1 = arith.constant 0 : i32
    return %c0_i32, %c0_i32_0 : i32, i32
  }
  func.func @transform_4(%arg0: i32) -> (i32, i32) {
    %c0_i32 = arith.constant 0 : i32
    %c0_i32_0 = arith.constant 0 : i32
    %c0_i32_1 = arith.constant 0 : i32
    return %c0_i32, %c0_i32_0 : i32, i32
  }
  func.func @transform_5(%arg0: i32) -> (i32, i32) {
    %c0_i32 = arith.constant 0 : i32
    %c0_i32_0 = arith.constant 0 : i32
    return %arg0, %c0_i32 : i32, i32
  }
}

module attributes {stable_mosaic.version = 11 : i64} {
  func.func @_appnp_prop_kernel(%arg0: i32, %arg1: i32, %arg2: memref<128x256xbf16, #tpu.memory_space<vmem>>, %arg3: memref<256x128xbf16, #tpu.memory_space<vmem>>, %arg4: memref<128x128xf32, #tpu.memory_space<vmem>>, %arg5: memref<512x128xbf16, #tpu.memory_space<vmem>>) attributes {dimension_semantics = [#tpu.dimension_semantics<arbitrary>, #tpu.dimension_semantics<arbitrary>], iteration_bounds = array<i64: 10, 2>, scalar_prefetch = 0 : i64, scratch_operands = 1 : i64, tpu.core_type = #tpu.core_type<tc>, window_params = [{transform_indices = @transform_0, window_bounds = array<i64: 128, 256>}, {pipeline_mode = #tpu.pipeline_mode<synchronous>, transform_indices = @transform_1, window_bounds = array<i64: 256, 128>}, {transform_indices = @transform_2, window_bounds = array<i64: 128, 128>}]} {
    %c0_i32 = arith.constant 0 : i32
    %0 = arith.cmpi eq, %arg0, %c0_i32 : i32
    %c0_i32_0 = arith.constant 0 : i32
    %1 = arith.cmpi eq, %arg1, %c0_i32_0 : i32
    %2 = arith.andi %0, %1 : i1
    %3 = arith.extui %2 : i1 to i32
    %c0_i32_1 = arith.constant 0 : i32
    %4 = arith.cmpi ne, %3, %c0_i32_1 : i32
    scf.if %4 {
      %c0_12 = arith.constant 0 : index
      %c0_13 = arith.constant 0 : index
      %31 = vector.load %arg3[%c0_12, %c0_13] : memref<256x128xbf16, #tpu.memory_space<vmem>>, vector<256x128xbf16>
      %c0_14 = arith.constant 0 : index
      %c0_15 = arith.constant 0 : index
      %32 = vector.load %arg5[%c0_14, %c0_15] : memref<512x128xbf16, #tpu.memory_space<vmem>>, vector<256x128xbf16>
      tpu.vector_store %arg5[%c0_14, %c0_15], %31 {strides = array<i32>} : memref<512x128xbf16, #tpu.memory_space<vmem>>, vector<256x128xbf16>,
    } else {
    }
    %c2_i32 = arith.constant 2 : i32
    %5 = arith.remsi %arg0, %c2_i32 : i32
    %c256_i32 = arith.constant 256 : i32
    %6 = arith.muli %5, %c256_i32 : i32
    %7 = tpu.assume_multiple %6, 256 : i32
    %c1_i32 = arith.constant 1 : i32
    %8 = arith.addi %arg0, %c1_i32 : i32
    %c2_i32_2 = arith.constant 2 : i32
    %9 = arith.remsi %8, %c2_i32_2 : i32
    %c256_i32_3 = arith.constant 256 : i32
    %10 = arith.muli %9, %c256_i32_3 : i32
    %11 = tpu.assume_multiple %10, 256 : i32
    %c128_i32 = arith.constant 128 : i32
    %12 = arith.muli %arg1, %c128_i32 : i32
    %13 = tpu.assume_multiple %12, 128 : i32
    %14 = arith.index_cast %7 : i32 to index
    %c0 = arith.constant 0 : index
    %15 = vector.load %arg5[%14, %c0] : memref<512x128xbf16, #tpu.memory_space<vmem>>, vector<256x128xbf16>
    %16 = arith.index_cast %13 : i32 to index
    %c0_4 = arith.constant 0 : index
    %17 = vector.load %arg3[%16, %c0_4] : memref<256x128xbf16, #tpu.memory_space<vmem>>, vector<128x128xbf16>
    %18 = arith.extf %17 : vector<128x128xbf16> to vector<128x128xf32>
    %c0_5 = arith.constant 0 : index
    %c0_6 = arith.constant 0 : index
    %19 = vector.load %arg2[%c0_5, %c0_6] : memref<128x256xbf16, #tpu.memory_space<vmem>>, vector<128x256xbf16>
    %cst = arith.constant dense<0.000000e+00> : vector<128x128xf32>
    %20 = tpu.matmul %19, %15, %cst {dimension_numbers = #tpu.dot_dimension_numbers<[1], [0], [0], [1], [0, 0, 1, 1], [], []>} : vector<128x256xbf16>, vector<256x128xbf16>, vector<128x128xf32> -> vector<128x128xf32>
    %cst_7 = arith.constant 0.899999976 : f32
    %21 = vector.broadcast %cst_7 : f32 to vector<128x128xf32>
    %22 = arith.mulf %21, %20 : vector<128x128xf32>
    %cst_8 = arith.constant 1.000000e-01 : f32
    %23 = vector.broadcast %cst_8 : f32 to vector<128x128xf32>
    %24 = arith.mulf %23, %18 : vector<128x128xf32>
    %25 = arith.addf %22, %24 : vector<128x128xf32>
    %26 = arith.truncf %25 : vector<128x128xf32> to vector<128x128xbf16>
    %27 = arith.addi %11, %13 : i32
    %28 = arith.index_cast %27 : i32 to index
    %c0_9 = arith.constant 0 : index
    %29 = vector.load %arg5[%28, %c0_9] : memref<512x128xbf16, #tpu.memory_space<vmem>>, vector<128x128xbf16>
    tpu.vector_store %arg5[%28, %c0_9], %26 {strides = array<i32>} : memref<512x128xbf16, #tpu.memory_space<vmem>>, vector<128x128xbf16>,
    %c0_10 = arith.constant 0 : index
    %c0_11 = arith.constant 0 : index
    %30 = vector.load %arg4[%c0_10, %c0_11] : memref<128x128xf32, #tpu.memory_space<vmem>>, vector<128x128xf32>
    tpu.vector_store %arg4[%c0_10, %c0_11], %25 {strides = array<i32>} : memref<128x128xf32, #tpu.memory_space<vmem>>, vector<128x128xf32>,
    return
  }
  func.func @transform_0(%arg0: i32, %arg1: i32) -> (i32, i32) {
    %c0_i32 = arith.constant 0 : i32
    %c0_i32_0 = arith.constant 0 : i32
    return %arg1, %c0_i32 : i32, i32
  }
  func.func @transform_1(%arg0: i32, %arg1: i32) -> (i32, i32) {
    %c0_i32 = arith.constant 0 : i32
    %c0_i32_0 = arith.constant 0 : i32
    %c0_i32_1 = arith.constant 0 : i32
    return %c0_i32, %c0_i32_0 : i32, i32
  }
  func.func @transform_2(%arg0: i32, %arg1: i32) -> (i32, i32) {
    %c0_i32 = arith.constant 0 : i32
    %c0_i32_0 = arith.constant 0 : i32
    return %arg1, %c0_i32 : i32, i32
  }
}

</mosaic_0001>

<llo_original>
// kernel: a_call__.2
$region0: #{a_call__.2}
  #allocation0 [shape = 'u32[]', space=smem, size = 0x4, offset = 0x4, fixed_abs, tag = 'smem constant byte address 0x4 - core index']
  #allocation1 [shape = 'u32[144,128]{1,0:T(1,128)}', space=vmem, size = 0x12000, scoped, tag = 'internal scratch']
  %s0 = inlined_call_operand.vmem [shape: bf16[256,128], index: 0, kind: input, shape index: {}]
  %s1 = inlined_call_operand.vmem [shape: bf16[128,128], index: 1, kind: input, shape index: {}]
  %s2 = inlined_call_operand.vmem [shape: f32[1,128], index: 2, kind: input, shape index: {}]
  %s3 = inlined_call_operand.vmem [shape: bf16[128,128], index: 3, kind: input, shape index: {}]
  %s4 = inlined_call_operand.vmem [shape: f32[1,128], index: 4, kind: input, shape index: {}]
  %s5 = inlined_call_operand.vmem [shape: bf16[256,128], index: 5, kind: output, shape index: {}]
  %s6 = sld [smem:[#allocation0]]
  $region30: #{a_call__.2} parent=0
    _
  %s8 = ssub.s32 1, %s6
  %s9 = scalar_select 0, %s8, %s6
  // Predicated region
  $region2: #{a_call__.2} parent=0 // pred_check
    _
  $region3: #{a_call__.2} parent=0 // pred_check_branch
    %11 = sbr.rel (0) target = $region5
  $region4: #{a_call__.2} parent=0 // pred_region
    _
  $region5: #{a_call__.2} parent=0 // pred_fallthru
    _
  // Predicated region
  $region6: #{a_call__.2} parent=0 // pred_check
    _
  $region7: #{a_call__.2} parent=0 // pred_check_branch
    %13 = sbr.rel (0) target = $region9
  $region8: #{a_call__.2} parent=0 // pred_region
    _
  $region9: #{a_call__.2} parent=0 // pred_fallthru
    _
  // Predicated region
  $region10: #{a_call__.2} parent=0 // pred_check
    _
  $region11: #{a_call__.2} parent=0 // pred_check_branch
    %15 = sbr.rel (0) target = $region13
  $region12: #{a_call__.2} parent=0 // pred_region
    _
  $region13: #{a_call__.2} parent=0 // pred_fallthru
    _
  // Predicated region
  $region14: #{a_call__.2} parent=0 // pred_check
    _
  $region15: #{a_call__.2} parent=0 // pred_check_branch
    %17 = sbr.rel (0) target = $region17
  $region16: #{a_call__.2} parent=0 // pred_region
    _
  $region17: #{a_call__.2} parent=0 // pred_fallthru
    _
  // Predicated region
  $region18: #{a_call__.2} parent=0 // pred_check
    _
  $region19: #{a_call__.2} parent=0 // pred_check_branch
    %19 = sbr.rel (0) target = $region21
  $region20: #{a_call__.2} parent=0 // pred_region
    _
  $region21: #{a_call__.2} parent=0 // pred_fallthru
    _
  %v21 = vld [vmem:[%s0] sm:$0xf]
  %v22 = vld [vmem:[%s0 + $0x4] sm:$0xf]
  %v23 = vld [vmem:[%s0 + $0x8] sm:$0xf]
  %v24 = vld [vmem:[%s0 + $0xc] sm:$0xf]
  %v25 = vld [vmem:[%s0 + $0x10] sm:$0xf]
  %v26 = vld [vmem:[%s0 + $0x14] sm:$0xf]
  %v27 = vld [vmem:[%s0 + $0x18] sm:$0xf]
  %v28 = vld [vmem:[%s0 + $0x1c] sm:$0xf]
  %v29 = vld [vmem:[%s0 + $0x20] sm:$0xf]
  %v30 = vld [vmem:[%s0 + $0x24] sm:$0xf]
  %v31 = vld [vmem:[%s0 + $0x28] sm:$0xf]
  %v32 = vld [vmem:[%s0 + $0x2c] sm:$0xf]
  %v33 = vld [vmem:[%s0 + $0x30] sm:$0xf]
  %v34 = vld [vmem:[%s0 + $0x34] sm:$0xf]
  %v35 = vld [vmem:[%s0 + $0x38] sm:$0xf]
  %v36 = vld [vmem:[%s0 + $0x3c] sm:$0xf]
  %v37 = vld [vmem:[%s0 + $0x40] sm:$0xf]
  %v38 = vld [vmem:[%s0 + $0x44] sm:$0xf]
  %v39 = vld [vmem:[%s0 + $0x48] sm:$0xf]
  %v40 = vld [vmem:[%s0 + $0x4c] sm:$0xf]
  %v41 = vld [vmem:[%s0 + $0x50] sm:$0xf]
  %v42 = vld [vmem:[%s0 + $0x54] sm:$0xf]
  %v43 = vld [vmem:[%s0 + $0x58] sm:$0xf]
  %v44 = vld [vmem:[%s0 + $0x5c] sm:$0xf]
  %v45 = vld [vmem:[%s0 + $0x60] sm:$0xf]
  %v46 = vld [vmem:[%s0 + $0x64] sm:$0xf]
  %v47 = vld [vmem:[%s0 + $0x68] sm:$0xf]
  %v48 = vld [vmem:[%s0 + $0x6c] sm:$0xf]
  %v49 = vld [vmem:[%s0 + $0x70] sm:$0xf]
  %v50 = vld [vmem:[%s0 + $0x74] sm:$0xf]
  %v51 = vld [vmem:[%s0 + $0x78] sm:$0xf]
  %v52 = vld [vmem:[%s0 + $0x7c] sm:$0xf]
  %v53 = vld [vmem:[%s1] sm:$0xf]
  %v54 = vld [vmem:[%s1 + $0x4] sm:$0xf]
  %v55 = vld [vmem:[%s1 + $0x8] sm:$0xf]
  %v56 = vld [vmem:[%s1 + $0xc] sm:$0xf]
  %v57 = vld [vmem:[%s1 + $0x10] sm:$0xf]
  %v58 = vld [vmem:[%s1 + $0x14] sm:$0xf]
  %v59 = vld [vmem:[%s1 + $0x18] sm:$0xf]
  %v60 = vld [vmem:[%s1 + $0x1c] sm:$0xf]
  %v61 = vld [vmem:[%s1 + $0x20] sm:$0xf]
  %v62 = vld [vmem:[%s1 + $0x24] sm:$0xf]
  %v63 = vld [vmem:[%s1 + $0x28] sm:$0xf]
  %v64 = vld [vmem:[%s1 + $0x2c] sm:$0xf]
  %v65 = vld [vmem:[%s1 + $0x30] sm:$0xf]
  %v66 = vld [vmem:[%s1 + $0x34] sm:$0xf]
  %v67 = vld [vmem:[%s1 + $0x38] sm:$0xf]
  %v68 = vld [vmem:[%s1 + $0x3c] sm:$0xf]
  %v69 = vld [vmem:[%s2] sm:$0x1]
  %v71 = vlaneseq
  %v72 = vshrl.u32 %v71, 7
  %v73 = vsub.s32 0, %v72
  %v74 = vrot.slane %v69, %v73
  %v108 = vunpack.c.l.b16 %v21
  %v109 = vunpack.c.l.b16 %v22
  %v110 = vunpack.c.l.b16 %v23
  %v111 = vunpack.c.l.b16 %v24
  %v112 = vunpack.c.l.b16 %v25
  %v113 = vunpack.c.l.b16 %v26
  %v114 = vunpack.c.l.b16 %v27
  %v115 = vunpack.c.l.b16 %v28
  %v116 = vunpack.c.l.b16 %v29
  %v117 = vunpack.c.l.b16 %v30
  %v118 = vunpack.c.l.b16 %v31
  %v119 = vunpack.c.l.b16 %v32
  %v120 = vunpack.c.l.b16 %v33
  %v121 = vunpack.c.l.b16 %v34
  %v122 = vunpack.c.l.b16 %v35
  %v123 = vunpack.c.l.b16 %v36
  %v124 = vunpack.c.l.b16 %v37
  %v125 = vunpack.c.l.b16 %v38
  %v126 = vunpack.c.l.b16 %v39
  %v127 = vunpack.c.l.b16 %v40
  %v128 = vunpack.c.l.b16 %v41
  %v129 = vunpack.c.l.b16 %v42
  %v130 = vunpack.c.l.b16 %v43
  %v131 = vunpack.c.l.b16 %v44
  %v132 = vunpack.c.l.b16 %v45
  %v133 = vunpack.c.l.b16 %v46
  %v134 = vunpack.c.l.b16 %v47
  %v135 = vunpack.c.l.b16 %v48
  %v136 = vunpack.c.l.b16 %v49
  %v137 = vunpack.c.l.b16 %v50
  %v138 = vunpack.c.l.b16 %v51
  %v139 = vunpack.c.l.b16 %v52
  %v140 = vpack.c.b16 %v109, %v108
  %v141 = vpack.c.b16 %v111, %v110
  %v142 = vpack.c.b16 %v113, %v112
  %v143 = vpack.c.b16 %v115, %v114
  %v144 = vpack.c.b16 %v117, %v116
  %v145 = vpack.c.b16 %v119, %v118
  %v146 = vpack.c.b16 %v121, %v120
  %v147 = vpack.c.b16 %v123, %v122
  %v148 = vpack.c.b16 %v125, %v124
  %v149 = vpack.c.b16 %v127, %v126
  %v150 = vpack.c.b16 %v129, %v128
  %v151 = vpack.c.b16 %v131, %v130
  %v152 = vpack.c.b16 %v133, %v132
  %v153 = vpack.c.b16 %v135, %v134
  %v154 = vpack.c.b16 %v137, %v136
  %v155 = vpack.c.b16 %v139, %v138
  %v188 = vunpack.c.l.b16 %v53
  %v189 = vunpack.c.l.b16 %v54
  %v190 = vunpack.c.l.b16 %v55
  %v191 = vunpack.c.l.b16 %v56
  %v192 = vunpack.c.l.b16 %v57
  %v193 = vunpack.c.l.b16 %v58
  %v194 = vunpack.c.l.b16 %v59
  %v195 = vunpack.c.l.b16 %v60
  %v196 = vunpack.c.l.b16 %v61
  %v197 = vunpack.c.l.b16 %v62
  %v198 = vunpack.c.l.b16 %v63
  %v199 = vunpack.c.l.b16 %v64
  %v200 = vunpack.c.l.b16 %v65
  %v201 = vunpack.c.l.b16 %v66
  %v202 = vunpack.c.l.b16 %v67
  %v203 = vunpack.c.l.b16 %v68
  %v204 = vpack.c.b16 %v189, %v188
  %v205 = vpack.c.b16 %v191, %v190
  %v206 = vpack.c.b16 %v193, %v192
  %v207 = vpack.c.b16 %v195, %v194
  %v208 = vpack.c.b16 %v197, %v196
  %v209 = vpack.c.b16 %v199, %v198
  %v210 = vpack.c.b16 %v201, %v200
  %v211 = vpack.c.b16 %v203, %v202
  %220 = vmatprep.subr.bf16.mxu0 0
  %221 = vmatpush1.bf16.msra.mxu0 %v211
  %222 = vmatprep.subr.bf16.mxu0 0
  %223 = vmatpush1.bf16.msra.mxu0 %v210
  %224 = vmatprep.subr.bf16.mxu0 0
  %225 = vmatpush1.bf16.msra.mxu0 %v209
  %226 = vmatprep.subr.bf16.mxu0 0
  %227 = vmatpush1.bf16.msra.mxu0 %v208
  %228 = vmatprep.subr.bf16.mxu0 0
  %229 = vmatpush1.bf16.msra.mxu0 %v207
  %230 = vmatprep.subr.bf16.mxu0 0
  %231 = vmatpush1.bf16.msra.mxu0 %v206
  %232 = vmatprep.subr.bf16.mxu0 0
  %233 = vmatpush1.bf16.msra.mxu0 %v205
  %234 = vmatprep.subr.bf16.mxu0 0
  %235 = vmatpush1.bf16.msra.mxu0 %v204
  %236 = vmatprep.subr.bf16.mxu0 0
  %237 = vmatpush2.bf16.msra.mxu0 0
  %238 = vmatprep.subr.bf16.mxu0 0
  %239 = vmatpush2.bf16.msra.mxu0 0
  %240 = vmatprep.subr.bf16.mxu0 0
  %241 = vmatpush2.bf16.msra.mxu0 0
  %242 = vmatprep.subr.bf16.mxu0 0
  %243 = vmatpush2.bf16.msra.mxu0 0
  %244 = vmatprep.subr.bf16.mxu0 0
  %245 = vmatpush2.bf16.msra.mxu0 0
  %246 = vmatprep.subr.bf16.mxu0 0
  %247 = vmatpush2.bf16.msra.mxu0 0
  %248 = vmatprep.subr.bf16.mxu0 0
  %249 = vmatpush2.bf16.msra.mxu0 0
  %250 = vmatprep.subr.bf16.mxu0 0
  %251 = vmatpush2.bf16.msra.mxu0 0
  %252 = vmatprep.mubr.bf16.mxu0 0
  %253 = vmatmul.mubr.bf16.gmra.mxu0 %v140
  %v254 = vpop.f32.mrf.mxu0
  %v255 = vadd.f32 %v74, %v254
  %v256 = vpop.f32.mrf.mxu0
  %v257 = vpop.f32.mrf.mxu0
  %v258 = vadd.f32 %v74, %v257
  %v259 = vpop.f32.mrf.mxu0
  %260 = vmatprep.mubr.bf16.mxu0 0
  %261 = vmatmul.mubr.bf16.gmra.mxu0 %v141
  %v262 = vpop.f32.mrf.mxu0
  %v263 = vadd.f32 %v74, %v262
  %v264 = vpop.f32.mrf.mxu0
  %v265 = vpop.f32.mrf.mxu0
  %v266 = vadd.f32 %v74, %v265
  %v267 = vpop.f32.mrf.mxu0
  %268 = vmatprep.mubr.bf16.mxu0 0
  %269 = vmatmul.mubr.bf16.gmra.mxu0 %v142
  %v270 = vpop.f32.mrf.mxu0
  %v271 = vadd.f32 %v74, %v270
  %v272 = vpop.f32.mrf.mxu0
  %v273 = vpop.f32.mrf.mxu0
  %v274 = vadd.f32 %v74, %v273
  %v275 = vpop.f32.mrf.mxu0
  %276 = vmatprep.mubr.bf16.mxu0 0
  %277 = vmatmul.mubr.bf16.gmra.mxu0 %v143
  %v278 = vpop.f32.mrf.mxu0
  %v279 = vadd.f32 %v74, %v278
  %v280 = vpop.f32.mrf.mxu0
  %v281 = vpop.f32.mrf.mxu0
  %v282 = vadd.f32 %v74, %v281
  %v283 = vpop.f32.mrf.mxu0
  %284 = vmatprep.mubr.bf16.mxu0 0
  %285 = vmatmul.mubr.bf16.gmra.mxu0 %v144
  %v286 = vpop.f32.mrf.mxu0
  %v287 = vadd.f32 %v74, %v286
  %v288 = vpop.f32.mrf.mxu0
  %v289 = vpop.f32.mrf.mxu0
  %v290 = vadd.f32 %v74, %v289
  %v291 = vpop.f32.mrf.mxu0
  %292 = vmatprep.mubr.bf16.mxu0 0
  %293 = vmatmul.mubr.bf16.gmra.mxu0 %v145
  %v294 = vpop.f32.mrf.mxu0
  %v295 = vadd.f32 %v74, %v294
  %v296 = vpop.f32.mrf.mxu0
  %v297 = vpop.f32.mrf.mxu0
  %v298 = vadd.f32 %v74, %v297
  %v299 = vpop.f32.mrf.mxu0
  %300 = vmatprep.mubr.bf16.mxu0 0
  %301 = vmatmul.mubr.bf16.gmra.mxu0 %v146
  %v302 = vpop.f32.mrf.mxu0
  %v303 = vadd.f32 %v74, %v302
  %v304 = vpop.f32.mrf.mxu0
  %v305 = vpop.f32.mrf.mxu0
  %v306 = vadd.f32 %v74, %v305
  %v307 = vpop.f32.mrf.mxu0
  %308 = vmatprep.mubr.bf16.mxu0 0
  %309 = vmatmul.mubr.bf16.gmra.mxu0 %v147
  %v310 = vpop.f32.mrf.mxu0
  %v311 = vadd.f32 %v74, %v310
  %v312 = vpop.f32.mrf.mxu0
  %v313 = vpop.f32.mrf.mxu0
  %v314 = vadd.f32 %v74, %v313
  %v315 = vpop.f32.mrf.mxu0
  %316 = vmatprep.mubr.bf16.mxu0 0
  %317 = vmatmul.mubr.bf16.gmra.mxu0 %v148
  %v318 = vpop.f32.mrf.mxu0
  %v319 = vadd.f32 %v74, %v318
  %v320 = vpop.f32.mrf.mxu0
  %v321 = vpop.f32.mrf.mxu0
  %v322 = vadd.f32 %v74, %v321
  %v323 = vpop.f32.mrf.mxu0
  %324 = vmatprep.mubr.bf16.mxu0 0
  %325 = vmatmul.mubr.bf16.gmra.mxu0 %v149
  %v326 = vpop.f32.mrf.mxu0
  %v327 = vadd.f32 %v74, %v326
  %v328 = vpop.f32.mrf.mxu0
  %v329 = vpop.f32.mrf.mxu0
  %v330 = vadd.f32 %v74, %v329
  %v331 = vpop.f32.mrf.mxu0
  %332 = vmatprep.mubr.bf16.mxu0 0
  %333 = vmatmul.mubr.bf16.gmra.mxu0 %v150
  %v334 = vpop.f32.mrf.mxu0
  %v335 = vadd.f32 %v74, %v334
  %v336 = vpop.f32.mrf.mxu0
  %v337 = vpop.f32.mrf.mxu0
  %v338 = vadd.f32 %v74, %v337
  %v339 = vpop.f32.mrf.mxu0
  %340 = vmatprep.mubr.bf16.mxu0 0
  %341 = vmatmul.mubr.bf16.gmra.mxu0 %v151
  %v342 = vpop.f32.mrf.mxu0
  %v343 = vadd.f32 %v74, %v342
  %v344 = vpop.f32.mrf.mxu0
  %v345 = vpop.f32.mrf.mxu0
  %v346 = vadd.f32 %v74, %v345
  %v347 = vpop.f32.mrf.mxu0
  %348 = vmatprep.mubr.bf16.mxu0 0
  %349 = vmatmul.mubr.bf16.gmra.mxu0 %v152
  %v350 = vpop.f32.mrf.mxu0
  %v351 = vadd.f32 %v74, %v350
  %v352 = vpop.f32.mrf.mxu0
  %v353 = vpop.f32.mrf.mxu0
  %v354 = vadd.f32 %v74, %v353
  %v355 = vpop.f32.mrf.mxu0
  %356 = vmatprep.mubr.bf16.mxu0 0
  %357 = vmatmul.mubr.bf16.gmra.mxu0 %v153
  %v358 = vpop.f32.mrf.mxu0
  %v359 = vadd.f32 %v74, %v358
  %v360 = vpop.f32.mrf.mxu0
  %v361 = vpop.f32.mrf.mxu0
  %v362 = vadd.f32 %v74, %v361
  %v363 = vpop.f32.mrf.mxu0
  %364 = vmatprep.mubr.bf16.mxu0 0
  %365 = vmatmul.mubr.bf16.gmra.mxu0 %v154
  %v366 = vpop.f32.mrf.mxu0
  %v367 = vadd.f32 %v74, %v366
  %v368 = vpop.f32.mrf.mxu0
  %v369 = vpop.f32.mrf.mxu0
  %v370 = vadd.f32 %v74, %v369
  %v371 = vpop.f32.mrf.mxu0
  %372 = vmatprep.mubr.bf16.mxu0 0
  %373 = vmatmul.mubr.bf16.gmra.mxu0 %v155
  %v374 = vpop.f32.mrf.mxu0
  %v375 = vadd.f32 %v74, %v374
  %v376 = vpop.f32.mrf.mxu0
  %v377 = vpop.f32.mrf.mxu0
  %v378 = vadd.f32 %v74, %v377
  %v379 = vpop.f32.mrf.mxu0
  %380 = vdwg.mxu0
  %v381 = vmax.f32 %v255, 0.0
  %v382 = vmax.f32 %v258, 0.0
  %v383 = vmax.f32 %v263, 0.0
  %v384 = vmax.f32 %v266, 0.0
  %v385 = vmax.f32 %v271, 0.0
  %v386 = vmax.f32 %v274, 0.0
  %v387 = vmax.f32 %v279, 0.0
  %v388 = vmax.f32 %v282, 0.0
  %v389 = vmax.f32 %v287, 0.0
  %v390 = vmax.f32 %v290, 0.0
  %v391 = vmax.f32 %v295, 0.0
  %v392 = vmax.f32 %v298, 0.0
  %v393 = vmax.f32 %v303, 0.0
  %v394 = vmax.f32 %v306, 0.0
  %v395 = vmax.f32 %v311, 0.0
  %v396 = vmax.f32 %v314, 0.0
  %v397 = vmax.f32 %v319, 0.0
  %v398 = vmax.f32 %v322, 0.0
  %v399 = vmax.f32 %v327, 0.0
  %v400 = vmax.f32 %v330, 0.0
  %v401 = vmax.f32 %v335, 0.0
  %v402 = vmax.f32 %v338, 0.0
  %v403 = vmax.f32 %v343, 0.0
  %v404 = vmax.f32 %v346, 0.0
  %v405 = vmax.f32 %v351, 0.0
  %v406 = vmax.f32 %v354, 0.0
  %v407 = vmax.f32 %v359, 0.0
  %v408 = vmax.f32 %v362, 0.0
  %v409 = vmax.f32 %v367, 0.0
  %v410 = vmax.f32 %v370, 0.0
  %v411 = vmax.f32 %v375, 0.0
  %v412 = vmax.f32 %v378, 0.0
  %v413 = vpack.c.bf16 %v382, %v381
  %v414 = vpack.c.bf16 %v384, %v383
  %v415 = vpack.c.bf16 %v386, %v385
  %v416 = vpack.c.bf16 %v388, %v387
  %v417 = vpack.c.bf16 %v390, %v389
  %v418 = vpack.c.bf16 %v392, %v391
  %v419 = vpack.c.bf16 %v394, %v393
  %v420 = vpack.c.bf16 %v396, %v395
  %v421 = vpack.c.bf16 %v398, %v397
  %v422 = vpack.c.bf16 %v400, %v399
  %v423 = vpack.c.bf16 %v402, %v401
  %v424 = vpack.c.bf16 %v404, %v403
  %v425 = vpack.c.bf16 %v406, %v405
  %v426 = vpack.c.bf16 %v408, %v407
  %v427 = vpack.c.bf16 %v410, %v409
  %v428 = vpack.c.bf16 %v412, %v411
  %v429 = vld [vmem:[%s3] sm:$0xf]
  %v430 = vld [vmem:[%s3 + $0x4] sm:$0xf]
  %v431 = vld [vmem:[%s3 + $0x8] sm:$0xf]
  %v432 = vld [vmem:[%s3 + $0xc] sm:$0xf]
  %v433 = vld [vmem:[%s3 + $0x10] sm:$0xf]
  %v434 = vld [vmem:[%s3 + $0x14] sm:$0xf]
  %v435 = vld [vmem:[%s3 + $0x18] sm:$0xf]
  %v436 = vld [vmem:[%s3 + $0x1c] sm:$0xf]
  %v437 = vld [vmem:[%s3 + $0x20] sm:$0xf]
  %v438 = vld [vmem:[%s3 + $0x24] sm:$0xf]
  %v439 = vld [vmem:[%s3 + $0x28] sm:$0xf]
  %v440 = vld [vmem:[%s3 + $0x2c] sm:$0xf]
  %v441 = vld [vmem:[%s3 + $0x30] sm:$0xf]
  %v442 = vld [vmem:[%s3 + $0x34] sm:$0xf]
  %v443 = vld [vmem:[%s3 + $0x38] sm:$0xf]
  %v444 = vld [vmem:[%s3 + $0x3c] sm:$0xf]
  %v445 = vld [vmem:[%s4] sm:$0x1]
  %v447 = vlaneseq
  %v448 = vshrl.u32 %v447, 7
  %v449 = vsub.s32 0, %v448
  %v450 = vrot.slane %v445, %v449
  %v468 = vunpack.c.l.b16 %v429
  %v469 = vunpack.c.l.b16 %v430
  %v470 = vunpack.c.l.b16 %v431
  %v471 = vunpack.c.l.b16 %v432
  %v472 = vunpack.c.l.b16 %v433
  %v473 = vunpack.c.l.b16 %v434
  %v474 = vunpack.c.l.b16 %v435
  %v475 = vunpack.c.l.b16 %v436
  %v476 = vunpack.c.l.b16 %v437
  %v477 = vunpack.c.l.b16 %v438
  %v478 = vunpack.c.l.b16 %v439
  %v479 = vunpack.c.l.b16 %v440
  %v480 = vunpack.c.l.b16 %v441
  %v481 = vunpack.c.l.b16 %v442
  %v482 = vunpack.c.l.b16 %v443
  %v483 = vunpack.c.l.b16 %v444
  %v484 = vpack.c.b16 %v469, %v468
  %v485 = vpack.c.b16 %v471, %v470
  %v486 = vpack.c.b16 %v473, %v472
  %v487 = vpack.c.b16 %v475, %v474
  %v488 = vpack.c.b16 %v477, %v476
  %v489 = vpack.c.b16 %v479, %v478
  %v490 = vpack.c.b16 %v481, %v480
  %v491 = vpack.c.b16 %v483, %v482
  %500 = vmatprep.subr.bf16.mxu0 0
  %501 = vmatpush1.bf16.msra.mxu0 %v491
  %502 = vmatprep.subr.bf16.mxu0 0
  %503 = vmatpush1.bf16.msra.mxu0 %v490
  %504 = vmatprep.subr.bf16.mxu0 0
  %505 = vmatpush1.bf16.msra.mxu0 %v489
  %506 = vmatprep.subr.bf16.mxu0 0
  %507 = vmatpush1.bf16.msra.mxu0 %v488
  %508 = vmatprep.subr.bf16.mxu0 0
  %509 = vmatpush1.bf16.msra.mxu0 %v487
  %510 = vmatprep.subr.bf16.mxu0 0
  %511 = vmatpush1.bf16.msra.mxu0 %v486
  %512 = vmatprep.subr.bf16.mxu0 0
  %513 = vmatpush1.bf16.msra.mxu0 %v485
  %514 = vmatprep.subr.bf16.mxu0 0
  %515 = vmatpush1.bf16.msra.mxu0 %v484
  %516 = vmatprep.subr.bf16.mxu0 0
  %517 = vmatpush2.bf16.msra.mxu0 0
  %518 = vmatprep.subr.bf16.mxu0 0
  %519 = vmatpush2.bf16.msra.mxu0 0
  %520 = vmatprep.subr.bf16.mxu0 0
  %521 = vmatpush2.bf16.msra.mxu0 0
  %522 = vmatprep.subr.bf16.mxu0 0
  %523 = vmatpush2.bf16.msra.mxu0 0
  %524 = vmatprep.subr.bf16.mxu0 0
  %525 = vmatpush2.bf16.msra.mxu0 0
  %526 = vmatprep.subr.bf16.mxu0 0
  %527 = vmatpush2.bf16.msra.mxu0 0
  %528 = vmatprep.subr.bf16.mxu0 0
  %529 = vmatpush2.bf16.msra.mxu0 0
  %530 = vmatprep.subr.bf16.mxu0 0
  %531 = vmatpush2.bf16.msra.mxu0 0
  %532 = vmatprep.mubr.bf16.mxu0 0
  %533 = vmatmul.mubr.bf16.gmra.mxu0 %v413
  %v534 = vpop.f32.mrf.mxu0
  %v535 = vadd.f32 %v450, %v534
  %v536 = vpop.f32.mrf.mxu0
  %v537 = vpop.f32.mrf.mxu0
  %v538 = vadd.f32 %v450, %v537
  %v539 = vpop.f32.mrf.mxu0
  %540 = vmatprep.mubr.bf16.mxu0 0
  %541 = vmatmul.mubr.bf16.gmra.mxu0 %v414
  %v542 = vpop.f32.mrf.mxu0
  %v543 = vadd.f32 %v450, %v542
  %v544 = vpop.f32.mrf.mxu0
  %v545 = vpop.f32.mrf.mxu0
  %v546 = vadd.f32 %v450, %v545
  %v547 = vpop.f32.mrf.mxu0
  %548 = vmatprep.mubr.bf16.mxu0 0
  %549 = vmatmul.mubr.bf16.gmra.mxu0 %v415
  %v550 = vpop.f32.mrf.mxu0
  %v551 = vadd.f32 %v450, %v550
  %v552 = vpop.f32.mrf.mxu0
  %v553 = vpop.f32.mrf.mxu0
  %v554 = vadd.f32 %v450, %v553
  %v555 = vpop.f32.mrf.mxu0
  %556 = vmatprep.mubr.bf16.mxu0 0
  %557 = vmatmul.mubr.bf16.gmra.mxu0 %v416
  %v558 = vpop.f32.mrf.mxu0
  %v559 = vadd.f32 %v450, %v558
  %v560 = vpop.f32.mrf.mxu0
  %v561 = vpop.f32.mrf.mxu0
  %v562 = vadd.f32 %v450, %v561
  %v563 = vpop.f32.mrf.mxu0
  %564 = vmatprep.mubr.bf16.mxu0 0
  %565 = vmatmul.mubr.bf16.gmra.mxu0 %v417
  %v566 = vpop.f32.mrf.mxu0
  %v567 = vadd.f32 %v450, %v566
  %v568 = vpop.f32.mrf.mxu0
  %v569 = vpop.f32.mrf.mxu0
  %v570 = vadd.f32 %v450, %v569
  %v571 = vpop.f32.mrf.mxu0
  %572 = vmatprep.mubr.bf16.mxu0 0
  %573 = vmatmul.mubr.bf16.gmra.mxu0 %v418
  %v574 = vpop.f32.mrf.mxu0
  %v575 = vadd.f32 %v450, %v574
  %v576 = vpop.f32.mrf.mxu0
  %v577 = vpop.f32.mrf.mxu0
  %v578 = vadd.f32 %v450, %v577
  %v579 = vpop.f32.mrf.mxu0
  %580 = vmatprep.mubr.bf16.mxu0 0
  %581 = vmatmul.mubr.bf16.gmra.mxu0 %v419
  %v582 = vpop.f32.mrf.mxu0
  %v583 = vadd.f32 %v450, %v582
  %v584 = vpop.f32.mrf.mxu0
  %v585 = vpop.f32.mrf.mxu0
  %v586 = vadd.f32 %v450, %v585
  %v587 = vpop.f32.mrf.mxu0
  %588 = vmatprep.mubr.bf16.mxu0 0
  %589 = vmatmul.mubr.bf16.gmra.mxu0 %v420
  %v590 = vpop.f32.mrf.mxu0
  %v591 = vadd.f32 %v450, %v590
  %v592 = vpop.f32.mrf.mxu0
  %v593 = vpop.f32.mrf.mxu0
  %v594 = vadd.f32 %v450, %v593
  %v595 = vpop.f32.mrf.mxu0
  %596 = vmatprep.mubr.bf16.mxu0 0
  %597 = vmatmul.mubr.bf16.gmra.mxu0 %v421
  %v598 = vpop.f32.mrf.mxu0
  %v599 = vadd.f32 %v450, %v598
  %v600 = vpop.f32.mrf.mxu0
  %v601 = vpop.f32.mrf.mxu0
  %v602 = vadd.f32 %v450, %v601
  %v603 = vpop.f32.mrf.mxu0
  %604 = vmatprep.mubr.bf16.mxu0 0
  %605 = vmatmul.mubr.bf16.gmra.mxu0 %v422
  %v606 = vpop.f32.mrf.mxu0
  %v607 = vadd.f32 %v450, %v606
  %v608 = vpop.f32.mrf.mxu0
  %v609 = vpop.f32.mrf.mxu0
  %v610 = vadd.f32 %v450, %v609
  %v611 = vpop.f32.mrf.mxu0
  %612 = vmatprep.mubr.bf16.mxu0 0
  %613 = vmatmul.mubr.bf16.gmra.mxu0 %v423
  %v614 = vpop.f32.mrf.mxu0
  %v615 = vadd.f32 %v450, %v614
  %v616 = vpop.f32.mrf.mxu0
  %v617 = vpop.f32.mrf.mxu0
  %v618 = vadd.f32 %v450, %v617
  %v619 = vpop.f32.mrf.mxu0
  %620 = vmatprep.mubr.bf16.mxu0 0
  %621 = vmatmul.mubr.bf16.gmra.mxu0 %v424
  %v622 = vpop.f32.mrf.mxu0
  %v623 = vadd.f32 %v450, %v622
  %v624 = vpop.f32.mrf.mxu0
  %v625 = vpop.f32.mrf.mxu0
  %v626 = vadd.f32 %v450, %v625
  %v627 = vpop.f32.mrf.mxu0
  %628 = vmatprep.mubr.bf16.mxu0 0
  %629 = vmatmul.mubr.bf16.gmra.mxu0 %v425
  %v630 = vpop.f32.mrf.mxu0
  %v631 = vadd.f32 %v450, %v630
  %v632 = vpop.f32.mrf.mxu0
  %v633 = vpop.f32.mrf.mxu0
  %v634 = vadd.f32 %v450, %v633
  %v635 = vpop.f32.mrf.mxu0
  %636 = vmatprep.mubr.bf16.mxu0 0
  %637 = vmatmul.mubr.bf16.gmra.mxu0 %v426
  %v638 = vpop.f32.mrf.mxu0
  %v639 = vadd.f32 %v450, %v638
  %v640 = vpop.f32.mrf.mxu0
  %v641 = vpop.f32.mrf.mxu0
  %v642 = vadd.f32 %v450, %v641
  %v643 = vpop.f32.mrf.mxu0
  %644 = vmatprep.mubr.bf16.mxu0 0
  %645 = vmatmul.mubr.bf16.gmra.mxu0 %v427
  %v646 = vpop.f32.mrf.mxu0
  %v647 = vadd.f32 %v450, %v646
  %v648 = vpop.f32.mrf.mxu0
  %v649 = vpop.f32.mrf.mxu0
  %v650 = vadd.f32 %v450, %v649
  %v651 = vpop.f32.mrf.mxu0
  %652 = vmatprep.mubr.bf16.mxu0 0
  %653 = vmatmul.mubr.bf16.gmra.mxu0 %v428
  %v654 = vpop.f32.mrf.mxu0
  %v655 = vadd.f32 %v450, %v654
  %v656 = vpop.f32.mrf.mxu0
  %v657 = vpop.f32.mrf.mxu0
  %v658 = vadd.f32 %v450, %v657
  %v659 = vpop.f32.mrf.mxu0
  %660 = vdwg.mxu0
  %v661 = vpack.c.bf16 %v538, %v535
  %v662 = vpack.c.bf16 %v546, %v543
  %v663 = vpack.c.bf16 %v554, %v551
  %v664 = vpack.c.bf16 %v562, %v559
  %v665 = vpack.c.bf16 %v570, %v567
  %v666 = vpack.c.bf16 %v578, %v575
  %v667 = vpack.c.bf16 %v586, %v583
  %v668 = vpack.c.bf16 %v594, %v591
  %v669 = vpack.c.bf16 %v602, %v599
  %v670 = vpack.c.bf16 %v610, %v607
  %v671 = vpack.c.bf16 %v618, %v615
  %v672 = vpack.c.bf16 %v626, %v623
  %v673 = vpack.c.bf16 %v634, %v631
  %v674 = vpack.c.bf16 %v642, %v639
  %v675 = vpack.c.bf16 %v650, %v647
  %v676 = vpack.c.bf16 %v658, %v655
  %v693 = vunpack.c.l.b16 %v661
  %v694 = vunpack.c.h.b16 %v661
  %v695 = vunpack.c.l.b16 %v662
  %v696 = vunpack.c.h.b16 %v662
  %v697 = vunpack.c.l.b16 %v663
  %v698 = vunpack.c.h.b16 %v663
  %v699 = vunpack.c.l.b16 %v664
  %v700 = vunpack.c.h.b16 %v664
  %v701 = vunpack.c.l.b16 %v665
  %v702 = vunpack.c.h.b16 %v665
  %v703 = vunpack.c.l.b16 %v666
  %v704 = vunpack.c.h.b16 %v666
  %v705 = vunpack.c.l.b16 %v667
  %v706 = vunpack.c.h.b16 %v667
  %v707 = vunpack.c.l.b16 %v668
  %v708 = vunpack.c.h.b16 %v668
  %v709 = vunpack.c.l.b16 %v669
  %v710 = vunpack.c.h.b16 %v669
  %v711 = vunpack.c.l.b16 %v670
  %v712 = vunpack.c.h.b16 %v670
  %v713 = vunpack.c.l.b16 %v671
  %v714 = vunpack.c.h.b16 %v671
  %v715 = vunpack.c.l.b16 %v672
  %v716 = vunpack.c.h.b16 %v672
  %v717 = vunpack.c.l.b16 %v673
  %v718 = vunpack.c.h.b16 %v673
  %v719 = vunpack.c.l.b16 %v674
  %v720 = vunpack.c.h.b16 %v674
  %v721 = vunpack.c.l.b16 %v675
  %v722 = vunpack.c.h.b16 %v675
  %v723 = vunpack.c.l.b16 %v676
  %v724 = vunpack.c.h.b16 %v676
  %v725 = vpack.c.b16 %v693, %v693
  %v726 = vpack.c.b16 %v694, %v694
  %v727 = vpack.c.b16 %v695, %v695
  %v728 = vpack.c.b16 %v696, %v696
  %v729 = vpack.c.b16 %v697, %v697
  %v730 = vpack.c.b16 %v698, %v698
  %v731 = vpack.c.b16 %v699, %v699
  %v732 = vpack.c.b16 %v700, %v700
  %v733 = vpack.c.b16 %v701, %v701
  %v734 = vpack.c.b16 %v702, %v702
  %v735 = vpack.c.b16 %v703, %v703
  %v736 = vpack.c.b16 %v704, %v704
  %v737 = vpack.c.b16 %v705, %v705
  %v738 = vpack.c.b16 %v706, %v706
  %v739 = vpack.c.b16 %v707, %v707
  %v740 = vpack.c.b16 %v708, %v708
  %v741 = vpack.c.b16 %v709, %v709
  %v742 = vpack.c.b16 %v710, %v710
  %v743 = vpack.c.b16 %v711, %v711
  %v744 = vpack.c.b16 %v712, %v712
  %v745 = vpack.c.b16 %v713, %v713
  %v746 = vpack.c.b16 %v714, %v714
  %v747 = vpack.c.b16 %v715, %v715
  %v748 = vpack.c.b16 %v716, %v716
  %v749 = vpack.c.b16 %v717, %v717
  %v750 = vpack.c.b16 %v718, %v718
  %v751 = vpack.c.b16 %v719, %v719
  %v752 = vpack.c.b16 %v720, %v720
  %v753 = vpack.c.b16 %v721, %v721
  %v754 = vpack.c.b16 %v722, %v722
  %v755 = vpack.c.b16 %v723, %v723
  %v756 = vpack.c.b16 %v724, %v724
  %789 = vst [vmem:[%s5] sm:$0xf] %v725
  %790 = vst [vmem:[%s5 + $0x4] sm:$0xf] %v726
  %791 = vst [vmem:[%s5 + $0x8] sm:$0xf] %v727
  %792 = vst [vmem:[%s5 + $0xc] sm:$0xf] %v728
  %793 = vst [vmem:[%s5 + $0x10] sm:$0xf] %v729
  %794 = vst [vmem:[%s5 + $0x14] sm:$0xf] %v730
  %795 = vst [vmem:[%s5 + $0x18] sm:$0xf] %v731
  %796 = vst [vmem:[%s5 + $0x1c] sm:$0xf] %v732
  %797 = vst [vmem:[%s5 + $0x20] sm:$0xf] %v733
  %798 = vst [vmem:[%s5 + $0x24] sm:$0xf] %v734
  %799 = vst [vmem:[%s5 + $0x28] sm:$0xf] %v735
  %800 = vst [vmem:[%s5 + $0x2c] sm:$0xf] %v736
  %801 = vst [vmem:[%s5 + $0x30] sm:$0xf] %v737
  %802 = vst [vmem:[%s5 + $0x34] sm:$0xf] %v738
  %803 = vst [vmem:[%s5 + $0x38] sm:$0xf] %v739
  %804 = vst [vmem:[%s5 + $0x3c] sm:$0xf] %v740
  %805 = vst [vmem:[%s5 + $0x40] sm:$0xf] %v741
  %806 = vst [vmem:[%s5 + $0x44] sm:$0xf] %v742
  %807 = vst [vmem:[%s5 + $0x48] sm:$0xf] %v743
  %808 = vst [vmem:[%s5 + $0x4c] sm:$0xf] %v744
  %809 = vst [vmem:[%s5 + $0x50] sm:$0xf] %v745
  %810 = vst [vmem:[%s5 + $0x54] sm:$0xf] %v746
  %811 = vst [vmem:[%s5 + $0x58] sm:$0xf] %v747
  %812 = vst [vmem:[%s5 + $0x5c] sm:$0xf] %v748
  %813 = vst [vmem:[%s5 + $0x60] sm:$0xf] %v749
  %814 = vst [vmem:[%s5 + $0x64] sm:$0xf] %v750
  %815 = vst [vmem:[%s5 + $0x68] sm:$0xf] %v751
  %816 = vst [vmem:[%s5 + $0x6c] sm:$0xf] %v752
  %817 = vst [vmem:[%s5 + $0x70] sm:$0xf] %v753
  %818 = vst [vmem:[%s5 + $0x74] sm:$0xf] %v754
  %819 = vst [vmem:[%s5 + $0x78] sm:$0xf] %v755
  %820 = vst [vmem:[%s5 + $0x7c] sm:$0xf] %v756
  // Predicated region
  $region22: #{a_call__.2} parent=0 // pred_check
    _
  $region23: #{a_call__.2} parent=0 // pred_check_branch
    %822 = sbr.rel (0) target = $region25
  $region24: #{a_call__.2} parent=0 // pred_region
    _
  $region25: #{a_call__.2} parent=0 // pred_fallthru
    _
  // Predicated region
  $region26: #{a_call__.2} parent=0 // pred_check
    _
  $region27: #{a_call__.2} parent=0 // pred_check_branch
    %824 = sbr.rel (0) target = $region29
  $region28: #{a_call__.2} parent=0 // pred_region
    _
  $region29: #{a_call__.2} parent=0 // pred_fallthru
    _

// kernel: a_call__.3
$region0: #{a_call__.3}
  #allocation0 [shape = 'u32[]', space=smem, size = 0x4, offset = 0x4, fixed_abs, tag = 'smem constant byte address 0x4 - core index']
  #allocation1 [shape = 'u32[144,128]{1,0:T(1,128)}', space=vmem, size = 0x12000, scoped, tag = 'internal scratch']
  #allocation2 [shape = 'bf16[512,128]{1,0:T(8,128)(2,1)}', space=vmem, size = 0x20000, scoped, tag = 'scratch operand']
  %s0 = inlined_call_operand.vmem [shape: bf16[256,256], index: 0, kind: input, shape index: {}]
  %s1 = inlined_call_operand.vmem [shape: bf16[256,128], index: 1, kind: input, shape index: {}]
  %s2 = inlined_call_operand.vmem [shape: f32[256,128], index: 2, kind: output, shape index: {}]
  %s3 = sld [smem:[#allocation0]]
  $region45: #{a_call__.3} parent=0
    _
  %s5 = ssub.s32 1, %s3
  %s6 = scalar_select 0, %s5, %s3
  loop: start=0, step=1, limit=22
  $region2: #{a_call__.3} parent=0 // loop_pre_header
    _
  $region3: #{a_call__.3} parent=0 // loop_header
    %s8 = sphi 0, %s12
    %p9 = scmp.ge.s32.totalorder %s8, 22
    %s15 = sphi 0, %s27
    %s16 = sphi 0, %s23
    %s17 = sphi 0, %s15
    %s18 = sphi 0, %s16
    %s19 = sphi 0, %s17
    %s20 = sphi 0, %s18
    %s30 = sphi 0, %s32
    %s33 = sphi 0, %s30
    %s34 = sphi 0, %s33
    %s50 = sphi 0, %s34
    %s54 = sphi 0, %s54
    %s56 = sphi 0, %s54
    %s57 = sphi 0, %s56
    %s71 = sphi 0, %s57
    %s77 = sphi 0, %s79
    %s80 = sphi 0, %s77
    %s81 = sphi 0, %s80
    %s97 = sphi 0, %s81
  $region4: #{a_call__.3} parent=0 // loop_header_branch
    %11 = sbr.rel (%p9) target = $region8
  $region5: #{a_call__.3} parent=0 // loop_body
    %s13 = ssub.s32 %s8, 1
    %s14 = ssub.s32 %s8, 2
    %s21 = sadd.s32 1, %s16
    %p22 = scmp.ge.s32.totalorder %s21, 2
    %s23 = scalar_select %p22, 0, %s21
    %s24 = sadd.s32 1, %s15
    %s25 = scalar_select %p22, %s24, %s15
    %p26 = scmp.ge.s32.totalorder %s25, 10
    %s27 = scalar_select %p26, 0, %s25
    %s28 = ssub.s32 %s16, %s23
    %p29 = scmp.eq.s32.totalorder %s28, 0
    %s31 = sadd.s32 %s30, 1
    %s32 = scalar_select %p29, %s30, %s31
    %p35 = pneg %p29
    %p36 = scmp.eq.s32.totalorder %s8, 19
    %p37 = por %p35, %p36
    %p38 = scmp.ne.s32.totalorder %s30, %s33
    %p39 = scmp.eq.s32.totalorder %s8, 0
    %p40 = por %p38, %p39
    %p41 = scmp.ne.s32.totalorder %s30, %s33
    %p42 = scmp.eq.s32.totalorder %s13, 19
    %p43 = por %p41, %p42
    %p44 = scmp.ne.s32.totalorder %s33, %s34
    %p45 = scmp.eq.s32.totalorder %s13, 0
    %p46 = por %p44, %p45
    %p47 = scmp.ne.s32.totalorder %s33, %s34
    %p48 = scmp.eq.s32.totalorder %s14, 19
    %p49 = por %p47, %p48
    %p51 = scmp.ne.s32.totalorder %s34, %s50
    %p52 = scmp.eq.s32.totalorder %s14, 0
    %p53 = por %p51, %p52
    %s55 = sadd.s32 %s54, 1
    %p58 = scmp.eq.s32.totalorder %s8, 19
    %p59 = scmp.ne.s32.totalorder %s54, %s56
    %p60 = scmp.eq.s32.totalorder %s8, 0
    %p61 = por %p59, %p60
    %p62 = scmp.ne.s32.totalorder %s54, %s56
    %p63 = scmp.eq.s32.totalorder %s13, 19
    %p64 = por %p62, %p63
    %p65 = scmp.ne.s32.totalorder %s56, %s57
    %p66 = scmp.eq.s32.totalorder %s13, 0
    %p67 = por %p65, %p66
    %p68 = scmp.ne.s32.totalorder %s56, %s57
    %p69 = scmp.eq.s32.totalorder %s14, 19
    %p70 = por %p68, %p69
    %p72 = scmp.ne.s32.totalorder %s57, %s71
    %p73 = scmp.eq.s32.totalorder %s14, 0
    %p74 = por %p72, %p73
    %s75 = ssub.s32 %s16, %s23
    %p76 = scmp.eq.s32.totalorder %s75, 0
    %s78 = sadd.s32 %s77, 1
    %s79 = scalar_select %p76, %s77, %s78
    %p82 = pneg %p76
    %p83 = scmp.eq.s32.totalorder %s8, 19
    %p84 = por %p82, %p83
    %p85 = scmp.ne.s32.totalorder %s77, %s80
    %p86 = scmp.eq.s32.totalorder %s8, 0
    %p87 = por %p85, %p86
    %p88 = scmp.ne.s32.totalorder %s77, %s80
    %p89 = scmp.eq.s32.totalorder %s13, 19
    %p90 = por %p88, %p89
    %p91 = scmp.ne.s32.totalorder %s80, %s81
    %p92 = scmp.eq.s32.totalorder %s13, 0
    %p93 = por %p91, %p92
    %p94 = scmp.ne.s32.totalorder %s80, %s81
    %p95 = scmp.eq.s32.totalorder %s14, 19
    %p96 = por %p94, %p95
    %p98 = scmp.ne.s32.totalorder %s81, %s97
    %p99 = scmp.eq.s32.totalorder %s14, 0
    %p100 = por %p98, %p99
    %p101 = scmp.le.s32.totalorder 1, %s8
    %p102 = scmp.lt.s32.totalorder %s8, 21
    %p103 = pnand %p101, %p102
    %p104 = pneg %p103
    // Predicated region
    $region9: #{a_call__.3} parent=5 // pred_check
      _
    $region10: #{a_call__.3} parent=5 // pred_check_branch
      %106 = sbr.rel (%p103) target = $region12
    $region11: #{a_call__.3} parent=5 // pred_region
      %s107 = ssub.s32 %s8, 1
      // Predicated region
      $region13: #{a_call__.3} parent=11 // pred_check
        %p108 = pneg %p67
      $region14: #{a_call__.3} parent=11 // pred_check_branch
        %110 = sbr.rel (%p108) target = $region16
      $region15: #{a_call__.3} parent=11 // pred_region
        _
      $region16: #{a_call__.3} parent=11 // pred_fallthru
        _
    $region12: #{a_call__.3} parent=5 // pred_fallthru
      _
    %p111 = scmp.lt.s32.totalorder %s8, 20
    // Predicated region
    $region17: #{a_call__.3} parent=5 // pred_check
      %p112 = pneg %p111
    $region18: #{a_call__.3} parent=5 // pred_check_branch
      %114 = sbr.rel (%p112) target = $region20
    $region19: #{a_call__.3} parent=5 // pred_region
      // Predicated region
      $region21: #{a_call__.3} parent=19 // pred_check
        %p115 = pneg %p40
      $region22: #{a_call__.3} parent=19 // pred_check_branch
        %117 = sbr.rel (%p115) target = $region24
      $region23: #{a_call__.3} parent=19 // pred_region
        %s118 = smul.u32 16, %s16
        %p119 = scmp.lt.s32.totalorder %s118, 31
        %s120 = scalar_select %p119, %s118, 31
        %s121 = smul.addr %s120, 2
        %s122 = smul.addr %s121, 4
        %s123 = scalar_lea.vmem %s0, %s122
        %s124 = smul.u32 16, %s16
      $region24: #{a_call__.3} parent=19 // pred_fallthru
        _
    $region20: #{a_call__.3} parent=5 // pred_fallthru
      _
    %p125 = scmp.le.s32.totalorder 1, %s8
    %p126 = scmp.lt.s32.totalorder %s8, 21
    %p127 = pnand %p125, %p126
    %p128 = pneg %p127
    // Predicated region
    $region25: #{a_call__.3} parent=5 // pred_check
      _
    $region26: #{a_call__.3} parent=5 // pred_check_branch
      %130 = sbr.rel (%p127) target = $region28
    $region27: #{a_call__.3} parent=5 // pred_region
      %s131 = ssub.s32 %s8, 1
      %s132 = smul.u32 16, %s18
      %p133 = scmp.lt.s32.totalorder %s132, 31
      %s134 = scalar_select %p133, %s132, 31
      %s135 = smul.addr %s134, 2
      %s136 = smul.addr %s135, 4
      %s137 = scalar_lea.vmem %s0, %s136
      %p138 = pneg %p46
      %p139 = pneg %p43
      %p140 = pneg %p67
      %p141 = pneg %p64
      %p142 = pneg %p93
      %p143 = pneg %p90
      %s144 = smul.u32 16, %s18
      %p145 = scmp.lt.s32.totalorder %s144, 31
      %s146 = scalar_select %p145, %s144, 31
      %s147 = smul.addr %s146, 8
      %s148 = scalar_lea.vmem %s2, %s147
      %s149 = smul.u32 16, %s18
      %p150 = scmp.lt.s32.totalorder %s149, 31
      %s151 = scalar_select %p150, %s149, 31
      %s152 = smul.addr %s151, 2
      %s153 = smul.addr %s152, 4
      %s154 = scalar_lea.vmem %s0, %s153
      %s155 = smul.u32 16, %s18
      %s156 = smul.u32 16, %s18
      %p157 = scmp.lt.s32.totalorder %s156, 31
      %s158 = scalar_select %p157, %s156, 31
      %s159 = smul.addr %s158, 8
      %s160 = scalar_lea.vmem %s2, %s159
      %s161 = smul.u32 16, %s18
      %p163 = scmp.eq.s32.totalorder %s17, 0
      %p164 = scmp.eq.s32.totalorder %s18, 0
      %p165 = pnand %p163, %p164
      %p166 = pneg %p165
      // Predicated region
      $region29: #{a_call__.3} parent=27 // pred_check
        _
      $region30: #{a_call__.3} parent=27 // pred_check_branch
        %168 = sbr.rel (%p165) target = $region32
      $region31: #{a_call__.3} parent=27 // pred_region
        %v169 = vld [vmem:[%s1] sm:$0xf]
        %v170 = vld [vmem:[%s1 + $0x4] sm:$0xf]
        %v171 = vld [vmem:[%s1 + $0x8] sm:$0xf]
        %v172 = vld [vmem:[%s1 + $0xc] sm:$0xf]
        %v173 = vld [vmem:[%s1 + $0x10] sm:$0xf]
        %v174 = vld [vmem:[%s1 + $0x14] sm:$0xf]
        %v175 = vld [vmem:[%s1 + $0x18] sm:$0xf]
        %v176 = vld [vmem:[%s1 + $0x1c] sm:$0xf]
        %v177 = vld [vmem:[%s1 + $0x20] sm:$0xf]
        %v178 = vld [vmem:[%s1 + $0x24] sm:$0xf]
        %v179 = vld [vmem:[%s1 + $0x28] sm:$0xf]
        %v180 = vld [vmem:[%s1 + $0x2c] sm:$0xf]
        %v181 = vld [vmem:[%s1 + $0x30] sm:$0xf]
        %v182 = vld [vmem:[%s1 + $0x34] sm:$0xf]
        %v183 = vld [vmem:[%s1 + $0x38] sm:$0xf]
        %v184 = vld [vmem:[%s1 + $0x3c] sm:$0xf]
        %v185 = vld [vmem:[%s1 + $0x40] sm:$0xf]
        %v186 = vld [vmem:[%s1 + $0x44] sm:$0xf]
        %v187 = vld [vmem:[%s1 + $0x48] sm:$0xf]
        %v188 = vld [vmem:[%s1 + $0x4c] sm:$0xf]
        %v189 = vld [vmem:[%s1 + $0x50] sm:$0xf]
        %v190 = vld [vmem:[%s1 + $0x54] sm:$0xf]
        %v191 = vld [vmem:[%s1 + $0x58] sm:$0xf]
        %v192 = vld [vmem:[%s1 + $0x5c] sm:$0xf]
        %v193 = vld [vmem:[%s1 + $0x60] sm:$0xf]
        %v194 = vld [vmem:[%s1 + $0x64] sm:$0xf]
        %v195 = vld [vmem:[%s1 + $0x68] sm:$0xf]
        %v196 = vld [vmem:[%s1 + $0x6c] sm:$0xf]
        %v197 = vld [vmem:[%s1 + $0x70] sm:$0xf]
        %v198 = vld [vmem:[%s1 + $0x74] sm:$0xf]
        %v199 = vld [vmem:[%s1 + $0x78] sm:$0xf]
        %v200 = vld [vmem:[%s1 + $0x7c] sm:$0xf]
        %201 = vst [vmem:[#allocation2] sm:$0xf] %v169
        %202 = vst [vmem:[#allocation2 + $0x4] sm:$0xf] %v170
        %203 = vst [vmem:[#allocation2 + $0x8] sm:$0xf] %v171
        %204 = vst [vmem:[#allocation2 + $0xc] sm:$0xf] %v172
        %205 = vst [vmem:[#allocation2 + $0x10] sm:$0xf] %v173
        %206 = vst [vmem:[#allocation2 + $0x14] sm:$0xf] %v174
        %207 = vst [vmem:[#allocation2 + $0x18] sm:$0xf] %v175
        %208 = vst [vmem:[#allocation2 + $0x1c] sm:$0xf] %v176
        %209 = vst [vmem:[#allocation2 + $0x20] sm:$0xf] %v177
        %210 = vst [vmem:[#allocation2 + $0x24] sm:$0xf] %v178
        %211 = vst [vmem:[#allocation2 + $0x28] sm:$0xf] %v179
        %212 = vst [vmem:[#allocation2 + $0x2c] sm:$0xf] %v180
        %213 = vst [vmem:[#allocation2 + $0x30] sm:$0xf] %v181
        %214 = vst [vmem:[#allocation2 + $0x34] sm:$0xf] %v182
        %215 = vst [vmem:[#allocation2 + $0x38] sm:$0xf] %v183
        %216 = vst [vmem:[#allocation2 + $0x3c] sm:$0xf] %v184
        %217 = vst [vmem:[#allocation2 + $0x40] sm:$0xf] %v185
        %218 = vst [vmem:[#allocation2 + $0x44] sm:$0xf] %v186
        %219 = vst [vmem:[#allocation2 + $0x48] sm:$0xf] %v187
        %220 = vst [vmem:[#allocation2 + $0x4c] sm:$0xf] %v188
        %221 = vst [vmem:[#allocation2 + $0x50] sm:$0xf] %v189
        %222 = vst [vmem:[#allocation2 + $0x54] sm:$0xf] %v190
        %223 = vst [vmem:[#allocation2 + $0x58] sm:$0xf] %v191
        %224 = vst [vmem:[#allocation2 + $0x5c] sm:$0xf] %v192
        %225 = vst [vmem:[#allocation2 + $0x60] sm:$0xf] %v193
        %226 = vst [vmem:[#allocation2 + $0x64] sm:$0xf] %v194
        %227 = vst [vmem:[#allocation2 + $0x68] sm:$0xf] %v195
        %228 = vst [vmem:[#allocation2 + $0x6c] sm:$0xf] %v196
        %229 = vst [vmem:[#allocation2 + $0x70] sm:$0xf] %v197
        %230 = vst [vmem:[#allocation2 + $0x74] sm:$0xf] %v198
        %231 = vst [vmem:[#allocation2 + $0x78] sm:$0xf] %v199
        %232 = vst [vmem:[#allocation2 + $0x7c] sm:$0xf] %v200
      $region32: #{a_call__.3} parent=27 // pred_fallthru
        _
      %p233 = scmp.lt.s32.totalorder %s17, 0
      %s234 = ssub.s32 0, %s17
      %s235 = scalar_select %p233, %s234, %s17
      %s236 = sand.u32 %s235, 1
      %s237 = ssub.s32 0, %s236
      %s238 = scalar_select %p233, %s237, %s236
      %s239 = smul.u32 %s238, 256
      %s240 = sadd.s32 %s17, 1
      %p241 = scmp.lt.s32.totalorder %s240, 0
      %s242 = ssub.s32 0, %s240
      %s243 = scalar_select %p241, %s242, %s240
      %s244 = sand.u32 %s243, 1
      %s245 = ssub.s32 0, %s244
      %s246 = scalar_select %p241, %s245, %s244
      %s247 = smul.u32 %s246, 256
      %s248 = smul.u32 %s18, 128
      %s249 = sshra.s32 %s239, 3
      %s250 = sand.u32 %s239, 7
      %s251 = smul.addr %s249, 4
      %s252 = scalar_lea.vmem [#allocation2], %s251
      %v253 = vld [vmem:[%s252] sm:$0xf]
      %v254 = vld [vmem:[%s252 + $0x4] sm:$0xf]
      %v255 = vld [vmem:[%s252 + $0x8] sm:$0xf]
      %v256 = vld [vmem:[%s252 + $0xc] sm:$0xf]
      %v257 = vld [vmem:[%s252 + $0x10] sm:$0xf]
      %v258 = vld [vmem:[%s252 + $0x14] sm:$0xf]
      %v259 = vld [vmem:[%s252 + $0x18] sm:$0xf]
      %v260 = vld [vmem:[%s252 + $0x1c] sm:$0xf]
      %v261 = vld [vmem:[%s252 + $0x20] sm:$0xf]
      %v262 = vld [vmem:[%s252 + $0x24] sm:$0xf]
      %v263 = vld [vmem:[%s252 + $0x28] sm:$0xf]
      %v264 = vld [vmem:[%s252 + $0x2c] sm:$0xf]
      %v265 = vld [vmem:[%s252 + $0x30] sm:$0xf]
      %v266 = vld [vmem:[%s252 + $0x34] sm:$0xf]
      %v267 = vld [vmem:[%s252 + $0x38] sm:$0xf]
      %v268 = vld [vmem:[%s252 + $0x3c] sm:$0xf]
      %v269 = vld [vmem:[%s252 + $0x40] sm:$0xf]
      %v270 = vld [vmem:[%s252 + $0x44] sm:$0xf]
      %v271 = vld [vmem:[%s252 + $0x48] sm:$0xf]
      %v272 = vld [vmem:[%s252 + $0x4c] sm:$0xf]
      %v273 = vld [vmem:[%s252 + $0x50] sm:$0xf]
      %v274 = vld [vmem:[%s252 + $0x54] sm:$0xf]
      %v275 = vld [vmem:[%s252 + $0x58] sm:$0xf]
      %v276 = vld [vmem:[%s252 + $0x5c] sm:$0xf]
      %v277 = vld [vmem:[%s252 + $0x60] sm:$0xf]
      %v278 = vld [vmem:[%s252 + $0x64] sm:$0xf]
      %v279 = vld [vmem:[%s252 + $0x68] sm:$0xf]
      %v280 = vld [vmem:[%s252 + $0x6c] sm:$0xf]
      %v281 = vld [vmem:[%s252 + $0x70] sm:$0xf]
      %v282 = vld [vmem:[%s252 + $0x74] sm:$0xf]
      %v283 = vld [vmem:[%s252 + $0x78] sm:$0xf]
      %v284 = vld [vmem:[%s252 + $0x7c] sm:$0xf]
      %s285 = sshra.s32 %s248, 3
      %s286 = sand.u32 %s248, 7
      %s287 = smul.addr %s285, 4
      %s288 = scalar_lea.vmem %s1, %s287
      %v289 = vld [vmem:[%s288] sm:$0xf]
      %v290 = vld [vmem:[%s288 + $0x4] sm:$0xf]
      %v291 = vld [vmem:[%s288 + $0x8] sm:$0xf]
      %v292 = vld [vmem:[%s288 + $0xc] sm:$0xf]
      %v293 = vld [vmem:[%s288 + $0x10] sm:$0xf]
      %v294 = vld [vmem:[%s288 + $0x14] sm:$0xf]
      %v295 = vld [vmem:[%s288 + $0x18] sm:$0xf]
      %v296 = vld [vmem:[%s288 + $0x1c] sm:$0xf]
      %v297 = vld [vmem:[%s288 + $0x20] sm:$0xf]
      %v298 = vld [vmem:[%s288 + $0x24] sm:$0xf]
      %v299 = vld [vmem:[%s288 + $0x28] sm:$0xf]
      %v300 = vld [vmem:[%s288 + $0x2c] sm:$0xf]
      %v301 = vld [vmem:[%s288 + $0x30] sm:$0xf]
      %v302 = vld [vmem:[%s288 + $0x34] sm:$0xf]
      %v303 = vld [vmem:[%s288 + $0x38] sm:$0xf]
      %v304 = vld [vmem:[%s288 + $0x3c] sm:$0xf]
      %v305 = vunpack.c.l.bf16 %v289
      %v306 = vunpack.c.l.bf16 %v290
      %v307 = vunpack.c.l.bf16 %v291
      %v308 = vunpack.c.l.bf16 %v292
      %v309 = vunpack.c.l.bf16 %v293
      %v310 = vunpack.c.l.bf16 %v294
      %v311 = vunpack.c.l.bf16 %v295
      %v312 = vunpack.c.l.bf16 %v296
      %v313 = vunpack.c.l.bf16 %v297
      %v314 = vunpack.c.l.bf16 %v298
      %v315 = vunpack.c.l.bf16 %v299
      %v316 = vunpack.c.l.bf16 %v300
      %v317 = vunpack.c.l.bf16 %v301
      %v318 = vunpack.c.l.bf16 %v302
      %v319 = vunpack.c.l.bf16 %v303
      %v320 = vunpack.c.l.bf16 %v304
      %v321 = vld [vmem:[%s154] sm:$0xff]
      %v322 = vld [vmem:[%s154 + $0x8] sm:$0xff]
      %v323 = vld [vmem:[%s154 + $0x10] sm:$0xff]
      %v324 = vld [vmem:[%s154 + $0x18] sm:$0xff]
      %v325 = vld [vmem:[%s154 + $0x20] sm:$0xff]
      %v326 = vld [vmem:[%s154 + $0x28] sm:$0xff]
      %v327 = vld [vmem:[%s154 + $0x30] sm:$0xff]
      %v328 = vld [vmem:[%s154 + $0x38] sm:$0xff]
      %v329 = vld [vmem:[%s154 + $0x40] sm:$0xff]
      %v330 = vld [vmem:[%s154 + $0x48] sm:$0xff]
      %v331 = vld [vmem:[%s154 + $0x50] sm:$0xff]
      %v332 = vld [vmem:[%s154 + $0x58] sm:$0xff]
      %v333 = vld [vmem:[%s154 + $0x60] sm:$0xff]
      %v334 = vld [vmem:[%s154 + $0x68] sm:$0xff]
      %v335 = vld [vmem:[%s154 + $0x70] sm:$0xff]
      %v336 = vld [vmem:[%s154 + $0x78] sm:$0xff]
      %v353 = vunpack.c.l.b16 %v321
      %v354 = vunpack.c.h.b16 %v321
      %v355 = vunpack.c.l.b16 %v322
      %v356 = vunpack.c.h.b16 %v322
      %v357 = vunpack.c.l.b16 %v323
      %v358 = vunpack.c.h.b16 %v323
      %v359 = vunpack.c.l.b16 %v324
      %v360 = vunpack.c.h.b16 %v324
      %v361 = vunpack.c.l.b16 %v325
      %v362 = vunpack.c.h.b16 %v325
      %v363 = vunpack.c.l.b16 %v326
      %v364 = vunpack.c.h.b16 %v326
      %v365 = vunpack.c.l.b16 %v327
      %v366 = vunpack.c.h.b16 %v327
      %v367 = vunpack.c.l.b16 %v328
      %v368 = vunpack.c.h.b16 %v328
      %v369 = vunpack.c.l.b16 %v329
      %v370 = vunpack.c.h.b16 %v329
      %v371 = vunpack.c.l.b16 %v330
      %v372 = vunpack.c.h.b16 %v330
      %v373 = vunpack.c.l.b16 %v331
      %v374 = vunpack.c.h.b16 %v331
      %v375 = vunpack.c.l.b16 %v332
      %v376 = vunpack.c.h.b16 %v332
      %v377 = vunpack.c.l.b16 %v333
      %v378 = vunpack.c.h.b16 %v333
      %v379 = vunpack.c.l.b16 %v334
      %v380 = vunpack.c.h.b16 %v334
      %v381 = vunpack.c.l.b16 %v335
      %v382 = vunpack.c.h.b16 %v335
      %v383 = vunpack.c.l.b16 %v336
      %v384 = vunpack.c.h.b16 %v336
      %v385 = vpack.c.b16 %v355, %v353
      %v386 = vpack.c.b16 %v356, %v354
      %v387 = vpack.c.b16 %v359, %v357
      %v388 = vpack.c.b16 %v360, %v358
      %v389 = vpack.c.b16 %v363, %v361
      %v390 = vpack.c.b16 %v364, %v362
      %v391 = vpack.c.b16 %v367, %v365
      %v392 = vpack.c.b16 %v368, %v366
      %v393 = vpack.c.b16 %v371, %v369
      %v394 = vpack.c.b16 %v372, %v370
      %v395 = vpack.c.b16 %v375, %v373
      %v396 = vpack.c.b16 %v376, %v374
      %v397 = vpack.c.b16 %v379, %v377
      %v398 = vpack.c.b16 %v380, %v378
      %v399 = vpack.c.b16 %v383, %v381
      %v400 = vpack.c.b16 %v384, %v382
      %v449 = vunpack.c.l.b16 %v253
      %v450 = vunpack.c.l.b16 %v254
      %v451 = vunpack.c.l.b16 %v255
      %v452 = vunpack.c.l.b16 %v256
      %v453 = vunpack.c.l.b16 %v257
      %v454 = vunpack.c.l.b16 %v258
      %v455 = vunpack.c.l.b16 %v259
      %v456 = vunpack.c.l.b16 %v260
      %v457 = vunpack.c.l.b16 %v261
      %v458 = vunpack.c.l.b16 %v262
      %v459 = vunpack.c.l.b16 %v263
      %v460 = vunpack.c.l.b16 %v264
      %v461 = vunpack.c.l.b16 %v265
      %v462 = vunpack.c.l.b16 %v266
      %v463 = vunpack.c.l.b16 %v267
      %v464 = vunpack.c.l.b16 %v268
      %v465 = vunpack.c.l.b16 %v269
      %v466 = vunpack.c.l.b16 %v270
      %v467 = vunpack.c.l.b16 %v271
      %v468 = vunpack.c.l.b16 %v272
      %v469 = vunpack.c.l.b16 %v273
      %v470 = vunpack.c.l.b16 %v274
      %v471 = vunpack.c.l.b16 %v275
      %v472 = vunpack.c.l.b16 %v276
      %v473 = vunpack.c.l.b16 %v277
      %v474 = vunpack.c.l.b16 %v278
      %v475 = vunpack.c.l.b16 %v279
      %v476 = vunpack.c.l.b16 %v280
      %v477 = vunpack.c.l.b16 %v281
      %v478 = vunpack.c.l.b16 %v282
      %v479 = vunpack.c.l.b16 %v283
      %v480 = vunpack.c.l.b16 %v284
      %v481 = vpack.c.b16 %v450, %v449
      %v482 = vpack.c.b16 %v452, %v451
      %v483 = vpack.c.b16 %v454, %v453
      %v484 = vpack.c.b16 %v456, %v455
      %v485 = vpack.c.b16 %v458, %v457
      %v486 = vpack.c.b16 %v460, %v459
      %v487 = vpack.c.b16 %v462, %v461
      %v488 = vpack.c.b16 %v464, %v463
      %v489 = vpack.c.b16 %v466, %v465
      %v490 = vpack.c.b16 %v468, %v467
      %v491 = vpack.c.b16 %v470, %v469
      %v492 = vpack.c.b16 %v472, %v471
      %v493 = vpack.c.b16 %v474, %v473
      %v494 = vpack.c.b16 %v476, %v475
      %v495 = vpack.c.b16 %v478, %v477
      %v496 = vpack.c.b16 %v480, %v479
      %513 = vmatprep.subr.bf16.mxu0 0
      %514 = vmatpush1.bf16.msra.mxu0 %v488
      %515 = vmatprep.subr.bf16.mxu0 0
      %516 = vmatpush1.bf16.msra.mxu0 %v487
      %517 = vmatprep.subr.bf16.mxu0 0
      %518 = vmatpush1.bf16.msra.mxu0 %v486
      %519 = vmatprep.subr.bf16.mxu0 0
      %520 = vmatpush1.bf16.msra.mxu0 %v485
      %521 = vmatprep.subr.bf16.mxu0 0
      %522 = vmatpush1.bf16.msra.mxu0 %v484
      %523 = vmatprep.subr.bf16.mxu0 0
      %524 = vmatpush1.bf16.msra.mxu0 %v483
      %525 = vmatprep.subr.bf16.mxu0 0
      %526 = vmatpush1.bf16.msra.mxu0 %v482
      %527 = vmatprep.subr.bf16.mxu0 0
      %528 = vmatpush1.bf16.msra.mxu0 %v481
      %529 = vmatprep.subr.bf16.mxu0 0
      %530 = vmatpush2.bf16.msra.mxu0 %v496
      %531 = vmatprep.subr.bf16.mxu0 0
      %532 = vmatpush2.bf16.msra.mxu0 %v495
      %533 = vmatprep.subr.bf16.mxu0 0
      %534 = vmatpush2.bf16.msra.mxu0 %v494
      %535 = vmatprep.subr.bf16.mxu0 0
      %536 = vmatpush2.bf16.msra.mxu0 %v493
      %537 = vmatprep.subr.bf16.mxu0 0
      %538 = vmatpush2.bf16.msra.mxu0 %v492
      %539 = vmatprep.subr.bf16.mxu0 0
      %540 = vmatpush2.bf16.msra.mxu0 %v491
      %541 = vmatprep.subr.bf16.mxu0 0
      %542 = vmatpush2.bf16.msra.mxu0 %v490
      %543 = vmatprep.subr.bf16.mxu0 0
      %544 = vmatpush2.bf16.msra.mxu0 %v489
      %545 = vmatprep.mubr.bf16.mxu0 %v386
      %546 = vmatmul.mubr.bf16.gmra.mxu0 %v385
      %v547 = vpop.f32.mrf.mxu0
      %v548 = vadd.f32 0.0, %v547
      %v549 = vpop.f32.mrf.mxu0
      %v550 = vpop.f32.mrf.mxu0
      %v551 = vadd.f32 0.0, %v550
      %v552 = vpop.f32.mrf.mxu0
      %553 = vmatprep.mubr.bf16.mxu0 %v388
      %554 = vmatmul.mubr.bf16.gmra.mxu0 %v387
      %v555 = vpop.f32.mrf.mxu0
      %v556 = vadd.f32 0.0, %v555
      %v557 = vpop.f32.mrf.mxu0
      %v558 = vpop.f32.mrf.mxu0
      %v559 = vadd.f32 0.0, %v558
      %v560 = vpop.f32.mrf.mxu0
      %561 = vmatprep.mubr.bf16.mxu0 %v390
      %562 = vmatmul.mubr.bf16.gmra.mxu0 %v389
      %v563 = vpop.f32.mrf.mxu0
      %v564 = vadd.f32 0.0, %v563
      %v565 = vpop.f32.mrf.mxu0
      %v566 = vpop.f32.mrf.mxu0
      %v567 = vadd.f32 0.0, %v566
      %v568 = vpop.f32.mrf.mxu0
      %569 = vmatprep.mubr.bf16.mxu0 %v392
      %570 = vmatmul.mubr.bf16.gmra.mxu0 %v391
      %v571 = vpop.f32.mrf.mxu0
      %v572 = vadd.f32 0.0, %v571
      %v573 = vpop.f32.mrf.mxu0
      %v574 = vpop.f32.mrf.mxu0
      %v575 = vadd.f32 0.0, %v574
      %v576 = vpop.f32.mrf.mxu0
      %577 = vmatprep.mubr.bf16.mxu0 %v394
      %578 = vmatmul.mubr.bf16.gmra.mxu0 %v393
      %v579 = vpop.f32.mrf.mxu0
      %v580 = vadd.f32 0.0, %v579
      %v581 = vpop.f32.mrf.mxu0
      %v582 = vpop.f32.mrf.mxu0
      %v583 = vadd.f32 0.0, %v582
      %v584 = vpop.f32.mrf.mxu0
      %585 = vmatprep.mubr.bf16.mxu0 %v396
      %586 = vmatmul.mubr.bf16.gmra.mxu0 %v395
      %v587 = vpop.f32.mrf.mxu0
      %v588 = vadd.f32 0.0, %v587
      %v589 = vpop.f32.mrf.mxu0
      %v590 = vpop.f32.mrf.mxu0
      %v591 = vadd.f32 0.0, %v590
      %v592 = vpop.f32.mrf.mxu0
      %593 = vmatprep.mubr.bf16.mxu0 %v398
      %594 = vmatmul.mubr.bf16.gmra.mxu0 %v397
      %v595 = vpop.f32.mrf.mxu0
      %v596 = vadd.f32 0.0, %v595
      %v597 = vpop.f32.mrf.mxu0
      %v598 = vpop.f32.mrf.mxu0
      %v599 = vadd.f32 0.0, %v598
      %v600 = vpop.f32.mrf.mxu0
      %601 = vmatprep.mubr.bf16.mxu0 %v400
      %602 = vmatmul.mubr.bf16.gmra.mxu0 %v399
      %v603 = vpop.f32.mrf.mxu0
      %v604 = vadd.f32 0.0, %v603
      %v605 = vpop.f32.mrf.mxu0
      %v606 = vpop.f32.mrf.mxu0
      %v607 = vadd.f32 0.0, %v606
      %v608 = vpop.f32.mrf.mxu0
      %609 = vdwg.mxu0
      %v610 = vmul.f32 %v548, 0.9
      %v611 = vmul.f32 %v551, 0.9
      %v612 = vmul.f32 %v556, 0.9
      %v613 = vmul.f32 %v559, 0.9
      %v614 = vmul.f32 %v564, 0.9
      %v615 = vmul.f32 %v567, 0.9
      %v616 = vmul.f32 %v572, 0.9
      %v617 = vmul.f32 %v575, 0.9
      %v618 = vmul.f32 %v580, 0.9
      %v619 = vmul.f32 %v583, 0.9
      %v620 = vmul.f32 %v588, 0.9
      %v621 = vmul.f32 %v591, 0.9
      %v622 = vmul.f32 %v596, 0.9
      %v623 = vmul.f32 %v599, 0.9
      %v624 = vmul.f32 %v604, 0.9
      %v625 = vmul.f32 %v607, 0.9
      %v626 = vmul.f32 %v305, 0.1
      %v627 = vmul.f32 %v306, 0.1
      %v628 = vmul.f32 %v307, 0.1
      %v629 = vmul.f32 %v308, 0.1
      %v630 = vmul.f32 %v309, 0.1
      %v631 = vmul.f32 %v310, 0.1
      %v632 = vmul.f32 %v311, 0.1
      %v633 = vmul.f32 %v312, 0.1
      %v634 = vmul.f32 %v313, 0.1
      %v635 = vmul.f32 %v314, 0.1
      %v636 = vmul.f32 %v315, 0.1
      %v637 = vmul.f32 %v316, 0.1
      %v638 = vmul.f32 %v317, 0.1
      %v639 = vmul.f32 %v318, 0.1
      %v640 = vmul.f32 %v319, 0.1
      %v641 = vmul.f32 %v320, 0.1
      %v642 = vadd.f32 %v610, %v626
      %v643 = vadd.f32 %v611, %v627
      %v644 = vadd.f32 %v612, %v628
      %v645 = vadd.f32 %v613, %v629
      %v646 = vadd.f32 %v614, %v630
      %v647 = vadd.f32 %v615, %v631
      %v648 = vadd.f32 %v616, %v632
      %v649 = vadd.f32 %v617, %v633
      %v650 = vadd.f32 %v618, %v634
      %v651 = vadd.f32 %v619, %v635
      %v652 = vadd.f32 %v620, %v636
      %v653 = vadd.f32 %v621, %v637
      %v654 = vadd.f32 %v622, %v638
      %v655 = vadd.f32 %v623, %v639
      %v656 = vadd.f32 %v624, %v640
      %v657 = vadd.f32 %v625, %v641
      %v658 = vpack.c.bf16 %v643, %v642
      %v659 = vpack.c.bf16 %v645, %v644
      %v660 = vpack.c.bf16 %v647, %v646
      %v661 = vpack.c.bf16 %v649, %v648
      %v662 = vpack.c.bf16 %v651, %v650
      %v663 = vpack.c.bf16 %v653, %v652
      %v664 = vpack.c.bf16 %v655, %v654
      %v665 = vpack.c.bf16 %v657, %v656
      %s666 = sadd.s32 %s247, %s248
      %v675 = vunpack.c.l.b16 %v658
      %v676 = vunpack.c.h.b16 %v658
      %v677 = vunpack.c.l.b16 %v659
      %v678 = vunpack.c.h.b16 %v659
      %v679 = vunpack.c.l.b16 %v660
      %v680 = vunpack.c.h.b16 %v660
      %v681 = vunpack.c.l.b16 %v661
      %v682 = vunpack.c.h.b16 %v661
      %v683 = vunpack.c.l.b16 %v662
      %v684 = vunpack.c.h.b16 %v662
      %v685 = vunpack.c.l.b16 %v663
      %v686 = vunpack.c.h.b16 %v663
      %v687 = vunpack.c.l.b16 %v664
      %v688 = vunpack.c.h.b16 %v664
      %v689 = vunpack.c.l.b16 %v665
      %v690 = vunpack.c.h.b16 %v665
      %v691 = vpack.c.b16 %v675, %v675
      %v692 = vpack.c.b16 %v676, %v676
      %v693 = vpack.c.b16 %v677, %v677
      %v694 = vpack.c.b16 %v678, %v678
      %v695 = vpack.c.b16 %v679, %v679
      %v696 = vpack.c.b16 %v680, %v680
      %v697 = vpack.c.b16 %v681, %v681
      %v698 = vpack.c.b16 %v682, %v682
      %v699 = vpack.c.b16 %v683, %v683
      %v700 = vpack.c.b16 %v684, %v684
      %v701 = vpack.c.b16 %v685, %v685
      %v702 = vpack.c.b16 %v686, %v686
      %v703 = vpack.c.b16 %v687, %v687
      %v704 = vpack.c.b16 %v688, %v688
      %v705 = vpack.c.b16 %v689, %v689
      %v706 = vpack.c.b16 %v690, %v690
      %s723 = sshra.s32 %s666, 3
      %s724 = sand.u32 %s666, 7
      %s725 = smul.addr %s723, 4
      %s726 = scalar_lea.vmem [#allocation2], %s725
      %727 = vst [vmem:[%s726] sm:$0xf] %v691
      %728 = vst [vmem:[%s726 + $0x4] sm:$0xf] %v692
      %729 = vst [vmem:[%s726 + $0x8] sm:$0xf] %v693
      %730 = vst [vmem:[%s726 + $0xc] sm:$0xf] %v694
      %731 = vst [vmem:[%s726 + $0x10] sm:$0xf] %v695
      %732 = vst [vmem:[%s726 + $0x14] sm:$0xf] %v696
      %733 = vst [vmem:[%s726 + $0x18] sm:$0xf] %v697
      %734 = vst [vmem:[%s726 + $0x1c] sm:$0xf] %v698
      %735 = vst [vmem:[%s726 + $0x20] sm:$0xf] %v699
      %736 = vst [vmem:[%s726 + $0x24] sm:$0xf] %v700
      %737 = vst [vmem:[%s726 + $0x28] sm:$0xf] %v701
      %738 = vst [vmem:[%s726 + $0x2c] sm:$0xf] %v702
      %739 = vst [vmem:[%s726 + $0x30] sm:$0xf] %v703
      %740 = vst [vmem:[%s726 + $0x34] sm:$0xf] %v704
      %741 = vst [vmem:[%s726 + $0x38] sm:$0xf] %v705
      %742 = vst [vmem:[%s726 + $0x3c] sm:$0xf] %v706
      %743 = vst [vmem:[%s160] sm:$0xff] %v642
      %744 = vst [vmem:[%s160 + $0x8] sm:$0xff] %v643
      %745 = vst [vmem:[%s160 + $0x10] sm:$0xff] %v644
      %746 = vst [vmem:[%s160 + $0x18] sm:$0xff] %v645
      %747 = vst [vmem:[%s160 + $0x20] sm:$0xff] %v646
      %748 = vst [vmem:[%s160 + $0x28] sm:$0xff] %v647
      %749 = vst [vmem:[%s160 + $0x30] sm:$0xff] %v648
      %750 = vst [vmem:[%s160 + $0x38] sm:$0xff] %v649
      %751 = vst [vmem:[%s160 + $0x40] sm:$0xff] %v650
      %752 = vst [vmem:[%s160 + $0x48] sm:$0xff] %v651
      %753 = vst [vmem:[%s160 + $0x50] sm:$0xff] %v652
      %754 = vst [vmem:[%s160 + $0x58] sm:$0xff] %v653
      %755 = vst [vmem:[%s160 + $0x60] sm:$0xff] %v654
      %756 = vst [vmem:[%s160 + $0x68] sm:$0xff] %v655
      %757 = vst [vmem:[%s160 + $0x70] sm:$0xff] %v656
      %758 = vst [vmem:[%s160 + $0x78] sm:$0xff] %v657
      %s759 = smul.u32 16, %s18
      %p760 = scmp.lt.s32.totalorder %s759, 31
      %s761 = scalar_select %p760, %s759, 31
      %s762 = smul.addr %s761, 8
      %s763 = scalar_lea.vmem %s2, %s762
      // Predicated region
      $region33: #{a_call__.3} parent=27 // pred_check
        %p764 = pneg %p90
      $region34: #{a_call__.3} parent=27 // pred_check_branch
        %766 = sbr.rel (%p764) target = $region36
      $region35: #{a_call__.3} parent=27 // pred_region
        %s767 = smul.u32 16, %s18
      $region36: #{a_call__.3} parent=27 // pred_fallthru
        _
    $region28: #{a_call__.3} parent=5 // pred_fallthru
      _
    %p768 = scmp.le.s32.totalorder 2, %s8
    // Predicated region
    $region37: #{a_call__.3} parent=5 // pred_check
      %p769 = pneg %p768
    $region38: #{a_call__.3} parent=5 // pred_check_branch
      %771 = sbr.rel (%p769) target = $region40
    $region39: #{a_call__.3} parent=5 // pred_region
      %s772 = ssub.s32 %s8, 2
      // Predicated region
      $region41: #{a_call__.3} parent=39 // pred_check
        %p773 = pneg %p96
      $region42: #{a_call__.3} parent=39 // pred_check_branch
        %775 = sbr.rel (%p773) target = $region44
      $region43: #{a_call__.3} parent=39 // pred_region
        %s776 = smul.u32 16, %s20
        %p777 = scmp.lt.s32.totalorder %s776, 31
        %s778 = scalar_select %p777, %s776, 31
        %s779 = smul.addr %s778, 8
        %s780 = scalar_lea.vmem %s2, %s779
      $region44: #{a_call__.3} parent=39 // pred_fallthru
        _
    $region40: #{a_call__.3} parent=5 // pred_fallthru
      _
  $region6: #{a_call__.3} parent=0 // loop_footer
    %s12 = sadd.s32 1, %s8
  $region7: #{a_call__.3} parent=0 // loop_footer_branch
    %7 = sbr.rel target = $region3
  $region8: #{a_call__.3} parent=0 // loop_exit
    _

</llo_original>
